<compile_context>
chip_gen: v7x
topology: tpu7x:2x2x1
jax: 0.10.0
libtpu: 0.0.40
codegen_flags: <defaults>
</compile_context>

<pallas_src>
import jax
import jax.numpy as jnp
from jax.experimental import pallas as pl
from jax.experimental.pallas import tpu as pltpu


def _attention_pooling_kernel(tokens_ref, mask_ref, w1_ref, b1_ref, w2_ref, out_ref):
    # tokens_ref: (BB, T, F)   mask_ref: (BB, T)
    # w1_ref: (F, U)  b1_ref: (1, U)  w2_ref: (U, K)   out_ref: (BB, K, F)
    BB, T, F = tokens_ref.shape
    K = w2_ref.shape[1]

    t = tokens_ref[...]                                   # (BB, T, F)
    m = mask_ref[...]                                     # (BB, T)

    # linear1 + tanh and linear2 — fold the batch block into the matmul M dim
    # (M = BB*T) so the MXU rows fill. T is a multiple of 8 -> reshape is layout-free.
    t2d = t.reshape(BB * T, F)
    a = jnp.tanh(
        jnp.dot(t2d, w1_ref[...], preferred_element_type=jnp.float32) + b1_ref[...]
    )                                                     # (BB*T, U)
    scores = jnp.dot(a, w2_ref[...], preferred_element_type=jnp.float32)  # (BB*T, K)

    # Move to (BB, K, T) BEFORE the softmax: the reduction axis T goes lane-dense,
    # the mask broadcast is free, and no post-softmax transpose is needed.
    scores_kt = jnp.swapaxes(scores.reshape(BB, T, K), 1, 2)   # (BB, K, T)
    m_b = m[:, None, :]                                        # (BB, 1, T)

    # Masked softmax over T (AllenNLP default), two renormalizations fused:
    #   softmax(s*m)*m / (sum + 1e-13)  ==  e*m / (sum(e*m) + 1e-13*sum(e))
    masked = scores_kt * m_b                              # (BB, K, T)
    mx = jnp.max(masked, axis=-1, keepdims=True)          # (BB, K, 1)
    e = jnp.exp(masked - mx)
    em = e * m_b
    denom = (jnp.sum(em, axis=-1, keepdims=True)
             + 1e-13 * jnp.sum(e, axis=-1, keepdims=True))
    p = em * pl.reciprocal(denom, approx=False)           # (BB, K, T)

    # bmm: (BB, K, T) @ (BB, T, F) -> (BB, K, F). p is already (K, T), so the T
    # contraction needs no operand transposes.
    s = jnp.einsum("bkt,btf->bkf", p, t, preferred_element_type=jnp.float32)

    out_ref[...] = s.astype(out_ref.dtype)


def attention_pooling(tokens, mask, w1, b1, w2, *, block_b=128):
    """tokens: (B, T, F) f32, mask: (B, T) f32 (1.0 keep / 0.0 pad).

    Returns s: (B, K*F) f32, identical semantics to the PyTorch module.

    block_b: batches per grid step. Must be a multiple of 8 (sublane tiling of the
    (BB, T) mask block). Per-BB VMEM footprint is ~45-60 KB double-buffered, so
    block_b up to ~256 fits under every generation's scoped-VMEM default (16 MiB on
    v5e, 32 MiB on v6e/v7x). On v7x, prefer block_b <= ceil(B/2) rounded to 8 so the
    grid keeps >= 2 steps and both TensorCores get work. Padded batch rows (all-zero
    mask) produce zeros and are sliced off.
    """
    B, T, F = tokens.shape
    U = w1.shape[1]
    K = w2.shape[1]

    # Clamp the batch block to the (8-rounded) batch so tiny inputs don't pad to 128.
    BB = min(block_b, pl.cdiv(B, 8) * 8)
    assert BB % 8 == 0, "block_b must be a multiple of 8 (mask BlockSpec sublane tiling)"
    nb = pl.cdiv(B, BB)
    B_pad = nb * BB
    if B_pad != B:
        pad = B_pad - B
        tokens = jnp.pad(tokens, ((0, pad), (0, 0), (0, 0)))
        mask = jnp.pad(mask, ((0, pad), (0, 0)))

    mask = mask.astype(jnp.float32)
    b1_2d = b1.reshape(1, U)

    out = pl.pallas_call(
        _attention_pooling_kernel,
        out_shape=jax.ShapeDtypeStruct((B_pad, K, F), tokens.dtype),
        grid_spec=pltpu.PrefetchScalarGridSpec(
            num_scalar_prefetch=0,
            grid=(nb,),
            in_specs=[
                pl.BlockSpec((BB, T, F), lambda b: (b, 0, 0)),   # tokens (BB batches/step)
                pl.BlockSpec((BB, T), lambda b: (b, 0)),         # mask, lane-dense
                pl.BlockSpec((F, U), lambda b: (0, 0)),          # w1 (shared)
                pl.BlockSpec((1, U), lambda b: (0, 0)),          # b1 (shared)
                pl.BlockSpec((U, K), lambda b: (0, 0)),          # w2 (shared)
            ],
            out_specs=pl.BlockSpec((BB, K, F), lambda b: (b, 0, 0)),
        ),
        compiler_params=pltpu.CompilerParams(
            dimension_semantics=("parallel",),
        ),
    )(tokens, mask, w1, b1_2d, w2)

    # Contiguous flatten is free in XLA; drop the padded batch rows.
    return out[:B].reshape(B, K * F)


def _reference(tokens, mask, w1, b1, w2):
    # Pure-JAX reference mirroring the PyTorch forward (unfused masked_softmax).
    a = jnp.tanh(tokens @ w1 + b1)                        # (B, T, U)
    a = a @ w2                                            # (B, T, K)
    a = jnp.swapaxes(a, 1, 2)                             # (B, K, T)
    m = mask[:, None, :].astype(jnp.float32)              # (B, 1, T)
    p = jax.nn.softmax(a * m, axis=-1)
    p = p * m
    p = p / (jnp.sum(p, axis=-1, keepdims=True) + 1e-13)
    s = jnp.einsum("bkt,btf->bkf", p, tokens)
    return s.reshape(tokens.shape[0], -1)


if __name__ == "__main__":
    B, T, F = 12, 16, 32         # batch, seq, in_features
    U, K = 200, 5                # dimension_context_vector_u, number_context_vectors

    key = jax.random.PRNGKey(0)
    k_tok, k_mask, k_w1, k_b1, k_w2 = jax.random.split(key, 5)

    tokens = jax.random.normal(k_tok, (B, T, F), dtype=jnp.float32)
    # deterministic mask: some trailing padding tokens in a couple of batches
    mask = jnp.ones((B, T), dtype=jnp.float32)
    mask = mask.at[1, -4:].set(0.0)
    mask = mask.at[7, -8:].set(0.0)

    # PyTorch nn.Linear default init: U(-1/sqrt(fan_in), 1/sqrt(fan_in))
    bound1 = 1.0 / (F ** 0.5)
    w1 = jax.random.uniform(k_w1, (F, U), minval=-bound1, maxval=bound1, dtype=jnp.float32)
    b1 = jax.random.uniform(k_b1, (U,), minval=-bound1, maxval=bound1, dtype=jnp.float32)
    bound2 = 1.0 / (U ** 0.5)
    w2 = jax.random.uniform(k_w2, (U, K), minval=-bound2, maxval=bound2, dtype=jnp.float32)

    s = attention_pooling(tokens, mask, w1, b1, w2)   # block_b auto-clamps to 16 here
    s = jax.block_until_ready(s)

    s_ref = _reference(tokens, mask, w1, b1, w2)
    assert s.shape == (B, K * F)
    assert jnp.allclose(s, s_ref, atol=1e-5, rtol=1e-5), "mismatch vs reference"

    print("KERNEL_OK")
</pallas_src>

<mosaic_0001>
module attributes {stable_mosaic.version = 11 : i64} {
  func.func @_attention_pooling_kernel(%arg0: i32, %arg1: memref<16x16x32xf32, #tpu.memory_space<vmem>>, %arg2: memref<16x16xf32, #tpu.memory_space<vmem>>, %arg3: memref<32x200xf32, #tpu.memory_space<vmem>>, %arg4: memref<1x200xf32, #tpu.memory_space<vmem>>, %arg5: memref<200x5xf32, #tpu.memory_space<vmem>>, %arg6: memref<16x5x32xf32, #tpu.memory_space<vmem>>) attributes {dimension_semantics = [#tpu.dimension_semantics<parallel>], iteration_bounds = array<i64: 1>, scalar_prefetch = 0 : i64, scratch_operands = 0 : i64, tpu.core_type = #tpu.core_type<tc>, window_params = [{transform_indices = @transform_0, window_bounds = array<i64: 16, 16, 32>}, {transform_indices = @transform_1, window_bounds = array<i64: 16, 16>}, {pipeline_mode = #tpu.pipeline_mode<synchronous>, transform_indices = @transform_2, window_bounds = array<i64: 32, 200>}, {pipeline_mode = #tpu.pipeline_mode<synchronous>, transform_indices = @transform_3, window_bounds = array<i64: 1, 200>}, {pipeline_mode = #tpu.pipeline_mode<synchronous>, transform_indices = @transform_4, window_bounds = array<i64: 200, 5>}, {transform_indices = @transform_5, window_bounds = array<i64: 16, 5, 32>}]} {
    %c0 = arith.constant 0 : index
    %c0_0 = arith.constant 0 : index
    %c0_1 = arith.constant 0 : index
    %0 = vector.load %arg1[%c0, %c0_0, %c0_1] : memref<16x16x32xf32, #tpu.memory_space<vmem>>, vector<16x16x32xf32>
    %c0_2 = arith.constant 0 : index
    %c0_3 = arith.constant 0 : index
    %1 = vector.load %arg2[%c0_2, %c0_3] : memref<16x16xf32, #tpu.memory_space<vmem>>, vector<16x16xf32>
    %2 = vector.shape_cast %0 : vector<16x16x32xf32> to vector<256x32xf32>
    %c0_4 = arith.constant 0 : index
    %c0_5 = arith.constant 0 : index
    %3 = vector.load %arg3[%c0_4, %c0_5] : memref<32x200xf32, #tpu.memory_space<vmem>>, vector<32x200xf32>
    %cst = arith.constant dense<0.000000e+00> : vector<256x200xf32>
    %4 = tpu.matmul %2, %3, %cst {dimension_numbers = #tpu.dot_dimension_numbers<[1], [0], [0], [1], [0, 0, 1, 1], [], []>} : vector<256x32xf32>, vector<32x200xf32>, vector<256x200xf32> -> vector<256x200xf32>
    %c0_6 = arith.constant 0 : index
    %c0_7 = arith.constant 0 : index
    %5 = vector.load %arg4[%c0_6, %c0_7] : memref<1x200xf32, #tpu.memory_space<vmem>>, vector<1x200xf32>
    %6 = vector.broadcast %5 : vector<1x200xf32> to vector<256x200xf32>
    %7 = arith.addf %4, %6 : vector<256x200xf32>
    %8 = math.tanh %7 : vector<256x200xf32>
    %c0_8 = arith.constant 0 : index
    %c0_9 = arith.constant 0 : index
    %9 = vector.load %arg5[%c0_8, %c0_9] : memref<200x5xf32, #tpu.memory_space<vmem>>, vector<200x5xf32>
    %cst_10 = arith.constant dense<0.000000e+00> : vector<256x5xf32>
    %10 = tpu.matmul %8, %9, %cst_10 {dimension_numbers = #tpu.dot_dimension_numbers<[1], [0], [0], [1], [0, 0, 1, 1], [], []>} : vector<256x200xf32>, vector<200x5xf32>, vector<256x5xf32> -> vector<256x5xf32>
    %11 = vector.shape_cast %10 : vector<256x5xf32> to vector<16x16x5xf32>
    %12 = tpu.transpose %11, [0, 2, 1] : vector<16x16x5xf32> -> vector<16x5x16xf32>
    %13 = vector.shape_cast %1 : vector<16x16xf32> to vector<16x1x16xf32>
    %14 = vector.broadcast %13 : vector<16x1x16xf32> to vector<16x5x16xf32>
    %15 = arith.mulf %12, %14 : vector<16x5x16xf32>
    %cst_11 = arith.constant dense<0xFF800000> : vector<16x5xf32>
    %16 = vector.multi_reduction <maximumf>, %15, %cst_11 [2] : vector<16x5x16xf32> to vector<16x5xf32>
    %17 = vector.shape_cast %16 : vector<16x5xf32> to vector<16x5x1xf32>
    %18 = vector.broadcast %17 : vector<16x5x1xf32> to vector<16x5x16xf32>
    %19 = arith.subf %15, %18 : vector<16x5x16xf32>
    %20 = math.exp %19 : vector<16x5x16xf32>
    %21 = vector.broadcast %13 : vector<16x1x16xf32> to vector<16x5x16xf32>
    %22 = arith.mulf %20, %21 : vector<16x5x16xf32>
    %cst_12 = arith.constant dense<0.000000e+00> : vector<16x5xf32>
    %23 = vector.multi_reduction <add>, %22, %cst_12 [2] : vector<16x5x16xf32> to vector<16x5xf32>
    %24 = vector.shape_cast %23 : vector<16x5xf32> to vector<16x5x1xf32>
    %cst_13 = arith.constant dense<0.000000e+00> : vector<16x5xf32>
    %25 = vector.multi_reduction <add>, %20, %cst_13 [2] : vector<16x5x16xf32> to vector<16x5xf32>
    %26 = vector.shape_cast %25 : vector<16x5xf32> to vector<16x5x1xf32>
    %cst_14 = arith.constant 9.99999982E-14 : f32
    %27 = vector.broadcast %cst_14 : f32 to vector<16x5x1xf32>
    %28 = arith.mulf %27, %26 : vector<16x5x1xf32>
    %29 = arith.addf %24, %28 : vector<16x5x1xf32>
    %30 = tpu.reciprocal %29 : vector<16x5x1xf32> -> vector<16x5x1xf32>
    %31 = vector.broadcast %30 : vector<16x5x1xf32> to vector<16x5x16xf32>
    %32 = arith.mulf %22, %31 : vector<16x5x16xf32>
    "tpu.trace_start"() <{level = 10 : i32, message = "bkt,btf->bkf"}> : () -> ()
    %cst_15 = arith.constant dense<0.000000e+00> : vector<16x5x32xf32>
    %33 = tpu.matmul %32, %0, %cst_15 {dimension_numbers = #tpu.dot_dimension_numbers<[2], [1], [1], [2], [0, 0, 0, 1, 1, 2], [0], [0]>} : vector<16x5x16xf32>, vector<16x16x32xf32>, vector<16x5x32xf32> -> vector<16x5x32xf32>
    "tpu.trace_stop"() : () -> ()
    %c0_16 = arith.constant 0 : index
    %c0_17 = arith.constant 0 : index
    %c0_18 = arith.constant 0 : index
    %34 = vector.load %arg6[%c0_16, %c0_17, %c0_18] : memref<16x5x32xf32, #tpu.memory_space<vmem>>, vector<16x5x32xf32>
    tpu.vector_store %arg6[%c0_16, %c0_17, %c0_18], %33 {strides = array<i32>} : memref<16x5x32xf32, #tpu.memory_space<vmem>>, vector<16x5x32xf32>,
    return
  }
  func.func @transform_0(%arg0: i32) -> (i32, i32, i32) {
    %c0_i32 = arith.constant 0 : i32
    %c0_i32_0 = arith.constant 0 : i32
    %c0_i32_1 = arith.constant 0 : i32
    return %arg0, %c0_i32, %c0_i32_0 : i32, i32, i32
  }
  func.func @transform_1(%arg0: i32) -> (i32, i32) {
    %c0_i32 = arith.constant 0 : i32
    %c0_i32_0 = arith.constant 0 : i32
    return %arg0, %c0_i32 : i32, i32
  }
  func.func @transform_2(%arg0: i32) -> (i32, i32) {
    %c0_i32 = arith.constant 0 : i32
    %c0_i32_0 = arith.constant 0 : i32
    %c0_i32_1 = arith.constant 0 : i32
    return %c0_i32, %c0_i32_0 : i32, i32
  }
  func.func @transform_3(%arg0: i32) -> (i32, i32) {
    %c0_i32 = arith.constant 0 : i32
    %c0_i32_0 = arith.constant 0 : i32
    %c0_i32_1 = arith.constant 0 : i32
    return %c0_i32, %c0_i32_0 : i32, i32
  }
  func.func @transform_4(%arg0: i32) -> (i32, i32) {
    %c0_i32 = arith.constant 0 : i32
    %c0_i32_0 = arith.constant 0 : i32
    %c0_i32_1 = arith.constant 0 : i32
    return %c0_i32, %c0_i32_0 : i32, i32
  }
  func.func @transform_5(%arg0: i32) -> (i32, i32, i32) {
    %c0_i32 = arith.constant 0 : i32
    %c0_i32_0 = arith.constant 0 : i32
    %c0_i32_1 = arith.constant 0 : i32
    return %arg0, %c0_i32, %c0_i32_0 : i32, i32, i32
  }
}

</mosaic_0001>

<llo_original>
// kernel: tpu_custom_call.1
$region0: #{tpu_custom_call.1}
  #allocation0 [shape = 'u32[]', space=smem, size = 0x4, offset = 0x4, fixed_abs, tag = 'smem constant byte address 0x4 - core index']
  #allocation1 [shape = 'u32[144,128]{1,0:T(1,128)}', space=vmem, size = 0x12000, scoped, tag = 'internal scratch']
  %s0 = inlined_call_operand.hbm [shape: f32[16,16,32], index: 0, kind: input, shape index: {}]
  %s1 = inlined_call_operand.vmem [shape: f32[16,16], index: 1, kind: input, shape index: {}]
  %s2 = inlined_call_operand.vmem [shape: f32[32,200], index: 2, kind: input, shape index: {}]
  %s3 = inlined_call_operand.vmem [shape: f32[1,200], index: 3, kind: input, shape index: {}]
  %s4 = inlined_call_operand.vmem [shape: f32[200,5], index: 4, kind: input, shape index: {}]
  %s5 = inlined_call_operand.vmem [shape: f32[16,5,32], index: 5, kind: output, shape index: {}]
  %s6 = sld [smem:[#allocation0]]
  $region34: #{tpu_custom_call.1} parent=0
    _
  %s8 = ssub.s32 1, %s6
  %s9 = scalar_select 0, %s8, %s6
  $region1: #{tpu_custom_call.1} parent=0
    #allocation2 [shape = 'u8[131072]{0}', space=vmem, size = 0x20000, scoped, tag = 'input window, operand 0, single buffered']
    #allocation3 [shape = 's32[1]{0}', space=sflag, size = 0x4, scoped, tag = 'scoped memory for tpu_custom_call.1']
    %10 = vsyncpa [#allocation3], 0
    // Predicated region
    $region2: #{tpu_custom_call.1} parent=1 // pred_check
      _
    $region3: #{tpu_custom_call.1} parent=1 // pred_check_branch
      %12 = sbr.rel (0) target = $region5
    $region4: #{tpu_custom_call.1} parent=1 // pred_region
      %s14 = ssub.s32 4096, 4096
      %15 = vsyncadd [#allocation3], %s14
      %s16 = sshll.u32 [#allocation2], 4
      %s17 = int_to_ptr.vmem [resolvable:$true] %s16
      %22 = dma.hbm_to_vmem [thread:$0]  %s0, 4096, %s17, [#allocation3], 128, 128, 8
    $region5: #{tpu_custom_call.1} parent=1 // pred_fallthru
      _
    // Predicated region
    $region6: #{tpu_custom_call.1} parent=1 // pred_check
      _
    $region7: #{tpu_custom_call.1} parent=1 // pred_check_branch
      %24 = sbr.rel (0) target = $region9
    $region8: #{tpu_custom_call.1} parent=1 // pred_region
      _
    $region9: #{tpu_custom_call.1} parent=1 // pred_fallthru
      _
    // Predicated region
    $region10: #{tpu_custom_call.1} parent=1 // pred_check
      _
    $region11: #{tpu_custom_call.1} parent=1 // pred_check_branch
      %26 = sbr.rel (0) target = $region13
    $region12: #{tpu_custom_call.1} parent=1 // pred_region
      _
    $region13: #{tpu_custom_call.1} parent=1 // pred_fallthru
      _
    // Predicated region
    $region14: #{tpu_custom_call.1} parent=1 // pred_check
      _
    $region15: #{tpu_custom_call.1} parent=1 // pred_check_branch
      %28 = sbr.rel (0) target = $region17
    $region16: #{tpu_custom_call.1} parent=1 // pred_region
      _
    $region17: #{tpu_custom_call.1} parent=1 // pred_fallthru
      _
    // Predicated region
    $region18: #{tpu_custom_call.1} parent=1 // pred_check
      _
    $region19: #{tpu_custom_call.1} parent=1 // pred_check_branch
      %30 = sbr.rel (0) target = $region21
    $region20: #{tpu_custom_call.1} parent=1 // pred_region
      _
    $region21: #{tpu_custom_call.1} parent=1 // pred_fallthru
      _
    // Predicated region
    $region22: #{tpu_custom_call.1} parent=1 // pred_check
      _
    $region23: #{tpu_custom_call.1} parent=1 // pred_check_branch
      %32 = sbr.rel (0) target = $region25
    $region24: #{tpu_custom_call.1} parent=1 // pred_region
      %33 = dma.done [#allocation3], 4096
    $region25: #{tpu_custom_call.1} parent=1 // pred_fallthru
      _
    %v34 = vld [vmem:[#allocation2] sm:$0xff]
    %v35 = vld [vmem:[#allocation2 + $0x8] sm:$0xff]
    %v36 = vld [vmem:[#allocation2 + $0x10] sm:$0xff]
    %v37 = vld [vmem:[#allocation2 + $0x18] sm:$0xff]
    %v38 = vld [vmem:[#allocation2 + $0x20] sm:$0xff]
    %v39 = vld [vmem:[#allocation2 + $0x28] sm:$0xff]
    %v40 = vld [vmem:[#allocation2 + $0x30] sm:$0xff]
    %v41 = vld [vmem:[#allocation2 + $0x38] sm:$0xff]
    %v42 = vld [vmem:[#allocation2 + $0x40] sm:$0xff]
    %v43 = vld [vmem:[#allocation2 + $0x48] sm:$0xff]
    %v44 = vld [vmem:[#allocation2 + $0x50] sm:$0xff]
    %v45 = vld [vmem:[#allocation2 + $0x58] sm:$0xff]
    %v46 = vld [vmem:[#allocation2 + $0x60] sm:$0xff]
    %v47 = vld [vmem:[#allocation2 + $0x68] sm:$0xff]
    %v48 = vld [vmem:[#allocation2 + $0x70] sm:$0xff]
    %v49 = vld [vmem:[#allocation2 + $0x78] sm:$0xff]
    %v50 = vld [vmem:[#allocation2 + $0x80] sm:$0xff]
    %v51 = vld [vmem:[#allocation2 + $0x88] sm:$0xff]
    %v52 = vld [vmem:[#allocation2 + $0x90] sm:$0xff]
    %v53 = vld [vmem:[#allocation2 + $0x98] sm:$0xff]
    %v54 = vld [vmem:[#allocation2 + $0xa0] sm:$0xff]
    %v55 = vld [vmem:[#allocation2 + $0xa8] sm:$0xff]
    %v56 = vld [vmem:[#allocation2 + $0xb0] sm:$0xff]
    %v57 = vld [vmem:[#allocation2 + $0xb8] sm:$0xff]
    %v58 = vld [vmem:[#allocation2 + $0xc0] sm:$0xff]
    %v59 = vld [vmem:[#allocation2 + $0xc8] sm:$0xff]
    %v60 = vld [vmem:[#allocation2 + $0xd0] sm:$0xff]
    %v61 = vld [vmem:[#allocation2 + $0xd8] sm:$0xff]
    %v62 = vld [vmem:[#allocation2 + $0xe0] sm:$0xff]
    %v63 = vld [vmem:[#allocation2 + $0xe8] sm:$0xff]
    %v64 = vld [vmem:[#allocation2 + $0xf0] sm:$0xff]
    %v65 = vld [vmem:[#allocation2 + $0xf8] sm:$0xff]
    %v66 = vld [vmem:[%s1] sm:$0xff]
    %v67 = vld [vmem:[%s1 + $0x8] sm:$0xff]
    %v68 = vld [vmem:[%s2] sm:$0xff]
    %v69 = vld [vmem:[%s2 + $0x8] sm:$0xff]
    %v70 = vld [vmem:[%s2 + $0x10] sm:$0xff]
    %v71 = vld [vmem:[%s2 + $0x18] sm:$0xff]
    %v72 = vld [vmem:[%s2 + $0x20] sm:$0xff]
    %v73 = vld [vmem:[%s2 + $0x28] sm:$0xff]
    %v74 = vld [vmem:[%s2 + $0x30] sm:$0xff]
    %v75 = vld [vmem:[%s2 + $0x38] sm:$0xff]
    %v76 = vld [vmem:[%s3] sm:$0x3]
    %v78 = vlaneseq
    %v79 = vshrl.u32 %v78, 7
    %v80 = vsub.s32 0, %v79
    %v81 = vrot.slane %v76, %v80
    %v82 = vlaneseq
    %v83 = vshrl.u32 %v82, 7
    %v84 = vsub.s32 1, %v83
    %v85 = vrot.slane %v76, %v84
    %vm88 = vcmask 261120
    %v90 = vsel %vm88, %v34, 0
    %v93 = vsel %vm88, %v35, 0
    %v96 = vsel %vm88, %v36, 0
    %v99 = vsel %vm88, %v37, 0
    %v102 = vsel %vm88, %v38, 0
    %v105 = vsel %vm88, %v39, 0
    %v108 = vsel %vm88, %v40, 0
    %v111 = vsel %vm88, %v41, 0
    %v114 = vsel %vm88, %v42, 0
    %v117 = vsel %vm88, %v43, 0
    %v120 = vsel %vm88, %v44, 0
    %v123 = vsel %vm88, %v45, 0
    %v126 = vsel %vm88, %v46, 0
    %v129 = vsel %vm88, %v47, 0
    %v132 = vsel %vm88, %v48, 0
    %v135 = vsel %vm88, %v49, 0
    %v138 = vsel %vm88, %v50, 0
    %v141 = vsel %vm88, %v51, 0
    %v144 = vsel %vm88, %v52, 0
    %v147 = vsel %vm88, %v53, 0
    %v150 = vsel %vm88, %v54, 0
    %v153 = vsel %vm88, %v55, 0
    %v156 = vsel %vm88, %v56, 0
    %v159 = vsel %vm88, %v57, 0
    %v162 = vsel %vm88, %v58, 0
    %v165 = vsel %vm88, %v59, 0
    %v168 = vsel %vm88, %v60, 0
    %v171 = vsel %vm88, %v61, 0
    %v174 = vsel %vm88, %v62, 0
    %v177 = vsel %vm88, %v63, 0
    %v180 = vsel %vm88, %v64, 0
    %v183 = vsel %vm88, %v65, 0
    %185 = vmatprep.subr.mxu0 %v69
    %186 = vmatpush1.msra.mxu0 %v68
    %187 = vmatprep.subr.mxu0 %v71
    %188 = vmatpush1.msra.mxu0 %v70
    %189 = vmatprep.subr.mxu0 %v73
    %190 = vmatpush1.msra.mxu0 %v72
    %191 = vmatprep.subr.mxu0 %v75
    %192 = vmatpush1.msra.mxu0 %v74
    %193 = vmatprep.subr.mxu0 0.0
    %194 = vmatpush1.msra.mxu0 0.0
    %195 = vmatprep.subr.mxu0 0.0
    %196 = vmatpush1.msra.mxu0 0.0
    %197 = vmatprep.subr.mxu0 0.0
    %198 = vmatpush1.msra.mxu0 0.0
    %199 = vmatprep.subr.mxu0 0.0
    %200 = vmatpush1.msra.mxu0 0.0
    %201 = vmatprep.subr.mxu0 0.0
    %202 = vmatpush1.msra.mxu0 0.0
    %203 = vmatprep.subr.mxu0 0.0
    %204 = vmatpush1.msra.mxu0 0.0
    %205 = vmatprep.subr.mxu0 0.0
    %206 = vmatpush1.msra.mxu0 0.0
    %207 = vmatprep.subr.mxu0 0.0
    %208 = vmatpush1.msra.mxu0 0.0
    %209 = vmatprep.subr.mxu0 0.0
    %210 = vmatpush1.msra.mxu0 0.0
    %211 = vmatprep.subr.mxu0 0.0
    %212 = vmatpush1.msra.mxu0 0.0
    %213 = vmatprep.subr.mxu0 0.0
    %214 = vmatpush1.msra.mxu0 0.0
    %215 = vmatprep.subr.mxu0 0.0
    %216 = vmatpush1.msra.mxu0 0.0
    %217 = vmatprep.subr.mxu0 0.0
    %218 = vmatpush1.msra.mxu0 0.0
    %219 = vmatprep.subr.mxu0 0.0
    %220 = vmatpush1.msra.mxu0 0.0
    %221 = vmatprep.subr.mxu0 0.0
    %222 = vmatpush1.msra.mxu0 0.0
    %223 = vmatprep.subr.mxu0 0.0
    %224 = vmatpush1.msra.mxu0 0.0
    %225 = vmatprep.subr.mxu0 0.0
    %226 = vmatpush1.msra.mxu0 0.0
    %227 = vmatprep.subr.mxu0 0.0
    %228 = vmatpush1.msra.mxu0 0.0
    %229 = vmatprep.subr.mxu0 0.0
    %230 = vmatpush1.msra.mxu0 0.0
    %231 = vmatprep.subr.mxu0 0.0
    %232 = vmatpush1.msra.mxu0 0.0
    %233 = vmatprep.subr.mxu0 0.0
    %234 = vmatpush1.msra.mxu0 0.0
    %235 = vmatprep.subr.mxu0 0.0
    %236 = vmatpush1.msra.mxu0 0.0
    %237 = vmatprep.subr.mxu0 0.0
    %238 = vmatpush1.msra.mxu0 0.0
    %239 = vmatprep.subr.mxu0 0.0
    %240 = vmatpush1.msra.mxu0 0.0
    %241 = vmatprep.subr.mxu0 0.0
    %242 = vmatpush1.msra.mxu0 0.0
    %243 = vmatprep.subr.mxu0 0.0
    %244 = vmatpush1.msra.mxu0 0.0
    %245 = vmatprep.subr.mxu0 0.0
    %246 = vmatpush1.msra.mxu0 0.0
    %247 = vmatprep.subr.mxu0 0.0
    %248 = vmatpush1.msra.mxu0 0.0
    %249 = vmatprep.mubr.f32.mxu0 0.0
    %250 = vmatmul.mubr.f32.gmra.mrb[0].mxu0 %v90
    %v251 = vpop.f32.mrb[0].mxu0
    %v252 = vadd.f32 %v81, %v251
    %v253 = vpop.f32.mrb[0].mxu0
    %v254 = vadd.f32 %v85, %v253
    %255 = vmatprep.mubr.f32.mxu0 0.0
    %256 = vmatmul.mubr.f32.gmra.mrb[0].mxu0 %v93
    %v257 = vpop.f32.mrb[0].mxu0
    %v258 = vadd.f32 %v81, %v257
    %v259 = vpop.f32.mrb[0].mxu0
    %v260 = vadd.f32 %v85, %v259
    %261 = vmatprep.mubr.f32.mxu0 0.0
    %262 = vmatmul.mubr.f32.gmra.mrb[0].mxu0 %v96
    %v263 = vpop.f32.mrb[0].mxu0
    %v264 = vadd.f32 %v81, %v263
    %v265 = vpop.f32.mrb[0].mxu0
    %v266 = vadd.f32 %v85, %v265
    %267 = vmatprep.mubr.f32.mxu0 0.0
    %268 = vmatmul.mubr.f32.gmra.mrb[0].mxu0 %v99
    %v269 = vpop.f32.mrb[0].mxu0
    %v270 = vadd.f32 %v81, %v269
    %v271 = vpop.f32.mrb[0].mxu0
    %v272 = vadd.f32 %v85, %v271
    %273 = vmatprep.mubr.f32.mxu0 0.0
    %274 = vmatmul.mubr.f32.gmra.mrb[0].mxu0 %v102
    %v275 = vpop.f32.mrb[0].mxu0
    %v276 = vadd.f32 %v81, %v275
    %v277 = vpop.f32.mrb[0].mxu0
    %v278 = vadd.f32 %v85, %v277
    %279 = vmatprep.mubr.f32.mxu0 0.0
    %280 = vmatmul.mubr.f32.gmra.mrb[0].mxu0 %v105
    %v281 = vpop.f32.mrb[0].mxu0
    %v282 = vadd.f32 %v81, %v281
    %v283 = vpop.f32.mrb[0].mxu0
    %v284 = vadd.f32 %v85, %v283
    %285 = vmatprep.mubr.f32.mxu0 0.0
    %286 = vmatmul.mubr.f32.gmra.mrb[0].mxu0 %v108
    %v287 = vpop.f32.mrb[0].mxu0
    %v288 = vadd.f32 %v81, %v287
    %v289 = vpop.f32.mrb[0].mxu0
    %v290 = vadd.f32 %v85, %v289
    %291 = vmatprep.mubr.f32.mxu0 0.0
    %292 = vmatmul.mubr.f32.gmra.mrb[0].mxu0 %v111
    %v293 = vpop.f32.mrb[0].mxu0
    %v294 = vadd.f32 %v81, %v293
    %v295 = vpop.f32.mrb[0].mxu0
    %v296 = vadd.f32 %v85, %v295
    %297 = vmatprep.mubr.f32.mxu0 0.0
    %298 = vmatmul.mubr.f32.gmra.mrb[0].mxu0 %v114
    %v299 = vpop.f32.mrb[0].mxu0
    %v300 = vadd.f32 %v81, %v299
    %v301 = vpop.f32.mrb[0].mxu0
    %v302 = vadd.f32 %v85, %v301
    %303 = vmatprep.mubr.f32.mxu0 0.0
    %304 = vmatmul.mubr.f32.gmra.mrb[0].mxu0 %v117
    %v305 = vpop.f32.mrb[0].mxu0
    %v306 = vadd.f32 %v81, %v305
    %v307 = vpop.f32.mrb[0].mxu0
    %v308 = vadd.f32 %v85, %v307
    %309 = vmatprep.mubr.f32.mxu0 0.0
    %310 = vmatmul.mubr.f32.gmra.mrb[0].mxu0 %v120
    %v311 = vpop.f32.mrb[0].mxu0
    %v312 = vadd.f32 %v81, %v311
    %v313 = vpop.f32.mrb[0].mxu0
    %v314 = vadd.f32 %v85, %v313
    %315 = vmatprep.mubr.f32.mxu0 0.0
    %316 = vmatmul.mubr.f32.gmra.mrb[0].mxu0 %v123
    %v317 = vpop.f32.mrb[0].mxu0
    %v318 = vadd.f32 %v81, %v317
    %v319 = vpop.f32.mrb[0].mxu0
    %v320 = vadd.f32 %v85, %v319
    %321 = vmatprep.mubr.f32.mxu0 0.0
    %322 = vmatmul.mubr.f32.gmra.mrb[0].mxu0 %v126
    %v323 = vpop.f32.mrb[0].mxu0
    %v324 = vadd.f32 %v81, %v323
    %v325 = vpop.f32.mrb[0].mxu0
    %v326 = vadd.f32 %v85, %v325
    %327 = vmatprep.mubr.f32.mxu0 0.0
    %328 = vmatmul.mubr.f32.gmra.mrb[0].mxu0 %v129
    %v329 = vpop.f32.mrb[0].mxu0
    %v330 = vadd.f32 %v81, %v329
    %v331 = vpop.f32.mrb[0].mxu0
    %v332 = vadd.f32 %v85, %v331
    %333 = vmatprep.mubr.f32.mxu0 0.0
    %334 = vmatmul.mubr.f32.gmra.mrb[0].mxu0 %v132
    %v335 = vpop.f32.mrb[0].mxu0
    %v336 = vadd.f32 %v81, %v335
    %v337 = vpop.f32.mrb[0].mxu0
    %v338 = vadd.f32 %v85, %v337
    %339 = vmatprep.mubr.f32.mxu0 0.0
    %340 = vmatmul.mubr.f32.gmra.mrb[0].mxu0 %v135
    %v341 = vpop.f32.mrb[0].mxu0
    %v342 = vadd.f32 %v81, %v341
    %v343 = vpop.f32.mrb[0].mxu0
    %v344 = vadd.f32 %v85, %v343
    %345 = vmatprep.mubr.f32.mxu0 0.0
    %346 = vmatmul.mubr.f32.gmra.mrb[0].mxu0 %v138
    %v347 = vpop.f32.mrb[0].mxu0
    %v348 = vadd.f32 %v81, %v347
    %v349 = vpop.f32.mrb[0].mxu0
    %v350 = vadd.f32 %v85, %v349
    %351 = vmatprep.mubr.f32.mxu0 0.0
    %352 = vmatmul.mubr.f32.gmra.mrb[0].mxu0 %v141
    %v353 = vpop.f32.mrb[0].mxu0
    %v354 = vadd.f32 %v81, %v353
    %v355 = vpop.f32.mrb[0].mxu0
    %v356 = vadd.f32 %v85, %v355
    %357 = vmatprep.mubr.f32.mxu0 0.0
    %358 = vmatmul.mubr.f32.gmra.mrb[0].mxu0 %v144
    %v359 = vpop.f32.mrb[0].mxu0
    %v360 = vadd.f32 %v81, %v359
    %v361 = vpop.f32.mrb[0].mxu0
    %v362 = vadd.f32 %v85, %v361
    %363 = vmatprep.mubr.f32.mxu0 0.0
    %364 = vmatmul.mubr.f32.gmra.mrb[0].mxu0 %v147
    %v365 = vpop.f32.mrb[0].mxu0
    %v366 = vadd.f32 %v81, %v365
    %v367 = vpop.f32.mrb[0].mxu0
    %v368 = vadd.f32 %v85, %v367
    %369 = vmatprep.mubr.f32.mxu0 0.0
    %370 = vmatmul.mubr.f32.gmra.mrb[0].mxu0 %v150
    %v371 = vpop.f32.mrb[0].mxu0
    %v372 = vadd.f32 %v81, %v371
    %v373 = vpop.f32.mrb[0].mxu0
    %v374 = vadd.f32 %v85, %v373
    %375 = vmatprep.mubr.f32.mxu0 0.0
    %376 = vmatmul.mubr.f32.gmra.mrb[0].mxu0 %v153
    %v377 = vpop.f32.mrb[0].mxu0
    %v378 = vadd.f32 %v81, %v377
    %v379 = vpop.f32.mrb[0].mxu0
    %v380 = vadd.f32 %v85, %v379
    %381 = vmatprep.mubr.f32.mxu0 0.0
    %382 = vmatmul.mubr.f32.gmra.mrb[0].mxu0 %v156
    %v383 = vpop.f32.mrb[0].mxu0
    %v384 = vadd.f32 %v81, %v383
    %v385 = vpop.f32.mrb[0].mxu0
    %v386 = vadd.f32 %v85, %v385
    %387 = vmatprep.mubr.f32.mxu0 0.0
    %388 = vmatmul.mubr.f32.gmra.mrb[0].mxu0 %v159
    %v389 = vpop.f32.mrb[0].mxu0
    %v390 = vadd.f32 %v81, %v389
    %v391 = vpop.f32.mrb[0].mxu0
    %v392 = vadd.f32 %v85, %v391
    %393 = vmatprep.mubr.f32.mxu0 0.0
    %394 = vmatmul.mubr.f32.gmra.mrb[0].mxu0 %v162
    %v395 = vpop.f32.mrb[0].mxu0
    %v396 = vadd.f32 %v81, %v395
    %v397 = vpop.f32.mrb[0].mxu0
    %v398 = vadd.f32 %v85, %v397
    %399 = vmatprep.mubr.f32.mxu0 0.0
    %400 = vmatmul.mubr.f32.gmra.mrb[0].mxu0 %v165
    %v401 = vpop.f32.mrb[0].mxu0
    %v402 = vadd.f32 %v81, %v401
    %v403 = vpop.f32.mrb[0].mxu0
    %v404 = vadd.f32 %v85, %v403
    %405 = vmatprep.mubr.f32.mxu0 0.0
    %406 = vmatmul.mubr.f32.gmra.mrb[0].mxu0 %v168
    %v407 = vpop.f32.mrb[0].mxu0
    %v408 = vadd.f32 %v81, %v407
    %v409 = vpop.f32.mrb[0].mxu0
    %v410 = vadd.f32 %v85, %v409
    %411 = vmatprep.mubr.f32.mxu0 0.0
    %412 = vmatmul.mubr.f32.gmra.mrb[0].mxu0 %v171
    %v413 = vpop.f32.mrb[0].mxu0
    %v414 = vadd.f32 %v81, %v413
    %v415 = vpop.f32.mrb[0].mxu0
    %v416 = vadd.f32 %v85, %v415
    %417 = vmatprep.mubr.f32.mxu0 0.0
    %418 = vmatmul.mubr.f32.gmra.mrb[0].mxu0 %v174
    %v419 = vpop.f32.mrb[0].mxu0
    %v420 = vadd.f32 %v81, %v419
    %v421 = vpop.f32.mrb[0].mxu0
    %v422 = vadd.f32 %v85, %v421
    %423 = vmatprep.mubr.f32.mxu0 0.0
    %424 = vmatmul.mubr.f32.gmra.mrb[0].mxu0 %v177
    %v425 = vpop.f32.mrb[0].mxu0
    %v426 = vadd.f32 %v81, %v425
    %v427 = vpop.f32.mrb[0].mxu0
    %v428 = vadd.f32 %v85, %v427
    %429 = vmatprep.mubr.f32.mxu0 0.0
    %430 = vmatmul.mubr.f32.gmra.mrb[0].mxu0 %v180
    %v431 = vpop.f32.mrb[0].mxu0
    %v432 = vadd.f32 %v81, %v431
    %v433 = vpop.f32.mrb[0].mxu0
    %v434 = vadd.f32 %v85, %v433
    %435 = vmatprep.mubr.f32.mxu0 0.0
    %436 = vmatmul.mubr.f32.gmra.mrb[0].mxu0 %v183
    %v437 = vpop.f32.mrb[0].mxu0
    %v438 = vadd.f32 %v81, %v437
    %v439 = vpop.f32.mrb[0].mxu0
    %v440 = vadd.f32 %v85, %v439
    %441 = vdwg.mxu0
    %v442 = vtanh.pop %v252
    %v443 = vtanh.pop %v254
    %v444 = vtanh.pop %v258
    %v445 = vtanh.pop %v260
    %v446 = vtanh.pop %v264
    %v447 = vtanh.pop %v266
    %v448 = vtanh.pop %v270
    %v449 = vtanh.pop %v272
    %v450 = vtanh.pop %v276
    %v451 = vtanh.pop %v278
    %v452 = vtanh.pop %v282
    %v453 = vtanh.pop %v284
    %v454 = vtanh.pop %v288
    %v455 = vtanh.pop %v290
    %v456 = vtanh.pop %v294
    %v457 = vtanh.pop %v296
    %v458 = vtanh.pop %v300
    %v459 = vtanh.pop %v302
    %v460 = vtanh.pop %v306
    %v461 = vtanh.pop %v308
    %v462 = vtanh.pop %v312
    %v463 = vtanh.pop %v314
    %v464 = vtanh.pop %v318
    %v465 = vtanh.pop %v320
    %v466 = vtanh.pop %v324
    %v467 = vtanh.pop %v326
    %v468 = vtanh.pop %v330
    %v469 = vtanh.pop %v332
    %v470 = vtanh.pop %v336
    %v471 = vtanh.pop %v338
    %v472 = vtanh.pop %v342
    %v473 = vtanh.pop %v344
    %v474 = vtanh.pop %v348
    %v475 = vtanh.pop %v350
    %v476 = vtanh.pop %v354
    %v477 = vtanh.pop %v356
    %v478 = vtanh.pop %v360
    %v479 = vtanh.pop %v362
    %v480 = vtanh.pop %v366
    %v481 = vtanh.pop %v368
    %v482 = vtanh.pop %v372
    %v483 = vtanh.pop %v374
    %v484 = vtanh.pop %v378
    %v485 = vtanh.pop %v380
    %v486 = vtanh.pop %v384
    %v487 = vtanh.pop %v386
    %v488 = vtanh.pop %v390
    %v489 = vtanh.pop %v392
    %v490 = vtanh.pop %v396
    %v491 = vtanh.pop %v398
    %v492 = vtanh.pop %v402
    %v493 = vtanh.pop %v404
    %v494 = vtanh.pop %v408
    %v495 = vtanh.pop %v410
    %v496 = vtanh.pop %v414
    %v497 = vtanh.pop %v416
    %v498 = vtanh.pop %v420
    %v499 = vtanh.pop %v422
    %v500 = vtanh.pop %v426
    %v501 = vtanh.pop %v428
    %v502 = vtanh.pop %v432
    %v503 = vtanh.pop %v434
    %v504 = vtanh.pop %v438
    %v505 = vtanh.pop %v440
    %v506 = vld [vmem:[%s4] sm:$0xff]
    %v507 = vld [vmem:[%s4 + $0x8] sm:$0xff]
    %v508 = vld [vmem:[%s4 + $0x10] sm:$0xff]
    %v509 = vld [vmem:[%s4 + $0x18] sm:$0xff]
    %v510 = vld [vmem:[%s4 + $0x20] sm:$0xff]
    %v511 = vld [vmem:[%s4 + $0x28] sm:$0xff]
    %v512 = vld [vmem:[%s4 + $0x30] sm:$0xff]
    %v513 = vld [vmem:[%s4 + $0x38] sm:$0xff]
    %v514 = vld [vmem:[%s4 + $0x40] sm:$0xff]
    %v515 = vld [vmem:[%s4 + $0x48] sm:$0xff]
    %v516 = vld [vmem:[%s4 + $0x50] sm:$0xff]
    %v517 = vld [vmem:[%s4 + $0x58] sm:$0xff]
    %v518 = vld [vmem:[%s4 + $0x60] sm:$0xff]
    %v519 = vld [vmem:[%s4 + $0x68] sm:$0xff]
    %v520 = vld [vmem:[%s4 + $0x70] sm:$0xff]
    %v521 = vld [vmem:[%s4 + $0x78] sm:$0xff]
    %v522 = vld [vmem:[%s4 + $0x80] sm:$0xff]
    %v523 = vld [vmem:[%s4 + $0x88] sm:$0xff]
    %v524 = vld [vmem:[%s4 + $0x90] sm:$0xff]
    %v525 = vld [vmem:[%s4 + $0x98] sm:$0xff]
    %v526 = vld [vmem:[%s4 + $0xa0] sm:$0xff]
    %v527 = vld [vmem:[%s4 + $0xa8] sm:$0xff]
    %v528 = vld [vmem:[%s4 + $0xb0] sm:$0xff]
    %v529 = vld [vmem:[%s4 + $0xb8] sm:$0xff]
    %v530 = vld [vmem:[%s4 + $0xc0] sm:$0xff]
    %vm531 = vcmask 588800
    %v533 = vsel %vm531, %v443, 0
    %v536 = vsel %vm531, %v445, 0
    %v539 = vsel %vm531, %v447, 0
    %v542 = vsel %vm531, %v449, 0
    %v545 = vsel %vm531, %v451, 0
    %v548 = vsel %vm531, %v453, 0
    %v551 = vsel %vm531, %v455, 0
    %v554 = vsel %vm531, %v457, 0
    %v557 = vsel %vm531, %v459, 0
    %v560 = vsel %vm531, %v461, 0
    %v563 = vsel %vm531, %v463, 0
    %v566 = vsel %vm531, %v465, 0
    %v569 = vsel %vm531, %v467, 0
    %v572 = vsel %vm531, %v469, 0
    %v575 = vsel %vm531, %v471, 0
    %v578 = vsel %vm531, %v473, 0
    %v581 = vsel %vm531, %v475, 0
    %v584 = vsel %vm531, %v477, 0
    %v587 = vsel %vm531, %v479, 0
    %v590 = vsel %vm531, %v481, 0
    %v593 = vsel %vm531, %v483, 0
    %v596 = vsel %vm531, %v485, 0
    %v599 = vsel %vm531, %v487, 0
    %v602 = vsel %vm531, %v489, 0
    %v605 = vsel %vm531, %v491, 0
    %v608 = vsel %vm531, %v493, 0
    %v611 = vsel %vm531, %v495, 0
    %v614 = vsel %vm531, %v497, 0
    %v617 = vsel %vm531, %v499, 0
    %v620 = vsel %vm531, %v501, 0
    %v623 = vsel %vm531, %v503, 0
    %v626 = vsel %vm531, %v505, 0
    %628 = vmatprep.subr.mxu0 0.0
    %629 = vmatpush1.msra.mxu0 %v506
    %630 = vmatprep.subr.mxu0 0.0
    %631 = vmatpush1.msra.mxu0 %v507
    %632 = vmatprep.subr.mxu0 0.0
    %633 = vmatpush1.msra.mxu0 %v508
    %634 = vmatprep.subr.mxu0 0.0
    %635 = vmatpush1.msra.mxu0 %v509
    %636 = vmatprep.subr.mxu0 0.0
    %637 = vmatpush1.msra.mxu0 %v510
    %638 = vmatprep.subr.mxu0 0.0
    %639 = vmatpush1.msra.mxu0 %v511
    %640 = vmatprep.subr.mxu0 0.0
    %641 = vmatpush1.msra.mxu0 %v512
    %642 = vmatprep.subr.mxu0 0.0
    %643 = vmatpush1.msra.mxu0 %v513
    %644 = vmatprep.subr.mxu0 0.0
    %645 = vmatpush1.msra.mxu0 %v514
    %646 = vmatprep.subr.mxu0 0.0
    %647 = vmatpush1.msra.mxu0 %v515
    %648 = vmatprep.subr.mxu0 0.0
    %649 = vmatpush1.msra.mxu0 %v516
    %650 = vmatprep.subr.mxu0 0.0
    %651 = vmatpush1.msra.mxu0 %v517
    %652 = vmatprep.subr.mxu0 0.0
    %653 = vmatpush1.msra.mxu0 %v518
    %654 = vmatprep.subr.mxu0 0.0
    %655 = vmatpush1.msra.mxu0 %v519
    %656 = vmatprep.subr.mxu0 0.0
    %657 = vmatpush1.msra.mxu0 %v520
    %658 = vmatprep.subr.mxu0 0.0
    %659 = vmatpush1.msra.mxu0 %v521
    %660 = vmatprep.subr.mxu0 0.0
    %661 = vmatpush1.msra.mxu0 %v522
    %662 = vmatprep.subr.mxu0 0.0
    %663 = vmatpush1.msra.mxu0 %v523
    %664 = vmatprep.subr.mxu0 0.0
    %665 = vmatpush1.msra.mxu0 %v524
    %666 = vmatprep.subr.mxu0 0.0
    %667 = vmatpush1.msra.mxu0 %v525
    %668 = vmatprep.subr.mxu0 0.0
    %669 = vmatpush1.msra.mxu0 %v526
    %670 = vmatprep.subr.mxu0 0.0
    %671 = vmatpush1.msra.mxu0 %v527
    %672 = vmatprep.subr.mxu0 0.0
    %673 = vmatpush1.msra.mxu0 %v528
    %674 = vmatprep.subr.mxu0 0.0
    %675 = vmatpush1.msra.mxu0 %v529
    %676 = vmatprep.subr.mxu0 0.0
    %677 = vmatpush1.msra.mxu0 %v530
    %678 = vmatprep.subr.mxu0 0.0
    %679 = vmatpush1.msra.mxu0 0.0
    %680 = vmatprep.subr.mxu0 0.0
    %681 = vmatpush1.msra.mxu0 0.0
    %682 = vmatprep.subr.mxu0 0.0
    %683 = vmatpush1.msra.mxu0 0.0
    %684 = vmatprep.subr.mxu0 0.0
    %685 = vmatpush1.msra.mxu0 0.0
    %686 = vmatprep.subr.mxu0 0.0
    %687 = vmatpush1.msra.mxu0 0.0
    %688 = vmatprep.subr.mxu0 0.0
    %689 = vmatpush1.msra.mxu0 0.0
    %690 = vmatprep.subr.mxu0 0.0
    %691 = vmatpush1.msra.mxu0 0.0
    %692 = vmatprep.mubr.f32.mxu0 %v533
    %693 = vmatmul.mubr.f32.gmra.mrb[0].mxu0 %v442
    %v694 = vpop.f32.mrb[0].mxu0
    %v695 = vadd.f32 0.0, %v694
    %v696 = vpop.f32.mrb[0].mxu0
    %697 = vmatprep.mubr.f32.mxu0 %v536
    %698 = vmatmul.mubr.f32.gmra.mrb[0].mxu0 %v444
    %v699 = vpop.f32.mrb[0].mxu0
    %v700 = vadd.f32 0.0, %v699
    %v701 = vpop.f32.mrb[0].mxu0
    %702 = vmatprep.mubr.f32.mxu0 %v539
    %703 = vmatmul.mubr.f32.gmra.mrb[0].mxu0 %v446
    %v704 = vpop.f32.mrb[0].mxu0
    %v705 = vadd.f32 0.0, %v704
    %v706 = vpop.f32.mrb[0].mxu0
    %707 = vmatprep.mubr.f32.mxu0 %v542
    %708 = vmatmul.mubr.f32.gmra.mrb[0].mxu0 %v448
    %v709 = vpop.f32.mrb[0].mxu0
    %v710 = vadd.f32 0.0, %v709
    %v711 = vpop.f32.mrb[0].mxu0
    %712 = vmatprep.mubr.f32.mxu0 %v545
    %713 = vmatmul.mubr.f32.gmra.mrb[0].mxu0 %v450
    %v714 = vpop.f32.mrb[0].mxu0
    %v715 = vadd.f32 0.0, %v714
    %v716 = vpop.f32.mrb[0].mxu0
    %717 = vmatprep.mubr.f32.mxu0 %v548
    %718 = vmatmul.mubr.f32.gmra.mrb[0].mxu0 %v452
    %v719 = vpop.f32.mrb[0].mxu0
    %v720 = vadd.f32 0.0, %v719
    %v721 = vpop.f32.mrb[0].mxu0
    %722 = vmatprep.mubr.f32.mxu0 %v551
    %723 = vmatmul.mubr.f32.gmra.mrb[0].mxu0 %v454
    %v724 = vpop.f32.mrb[0].mxu0
    %v725 = vadd.f32 0.0, %v724
    %v726 = vpop.f32.mrb[0].mxu0
    %727 = vmatprep.mubr.f32.mxu0 %v554
    %728 = vmatmul.mubr.f32.gmra.mrb[0].mxu0 %v456
    %v729 = vpop.f32.mrb[0].mxu0
    %v730 = vadd.f32 0.0, %v729
    %v731 = vpop.f32.mrb[0].mxu0
    %732 = vmatprep.mubr.f32.mxu0 %v557
    %733 = vmatmul.mubr.f32.gmra.mrb[0].mxu0 %v458
    %v734 = vpop.f32.mrb[0].mxu0
    %v735 = vadd.f32 0.0, %v734
    %v736 = vpop.f32.mrb[0].mxu0
    %737 = vmatprep.mubr.f32.mxu0 %v560
    %738 = vmatmul.mubr.f32.gmra.mrb[0].mxu0 %v460
    %v739 = vpop.f32.mrb[0].mxu0
    %v740 = vadd.f32 0.0, %v739
    %v741 = vpop.f32.mrb[0].mxu0
    %742 = vmatprep.mubr.f32.mxu0 %v563
    %743 = vmatmul.mubr.f32.gmra.mrb[0].mxu0 %v462
    %v744 = vpop.f32.mrb[0].mxu0
    %v745 = vadd.f32 0.0, %v744
    %v746 = vpop.f32.mrb[0].mxu0
    %747 = vmatprep.mubr.f32.mxu0 %v566
    %748 = vmatmul.mubr.f32.gmra.mrb[0].mxu0 %v464
    %v749 = vpop.f32.mrb[0].mxu0
    %v750 = vadd.f32 0.0, %v749
    %v751 = vpop.f32.mrb[0].mxu0
    %752 = vmatprep.mubr.f32.mxu0 %v569
    %753 = vmatmul.mubr.f32.gmra.mrb[0].mxu0 %v466
    %v754 = vpop.f32.mrb[0].mxu0
    %v755 = vadd.f32 0.0, %v754
    %v756 = vpop.f32.mrb[0].mxu0
    %757 = vmatprep.mubr.f32.mxu0 %v572
    %758 = vmatmul.mubr.f32.gmra.mrb[0].mxu0 %v468
    %v759 = vpop.f32.mrb[0].mxu0
    %v760 = vadd.f32 0.0, %v759
    %v761 = vpop.f32.mrb[0].mxu0
    %762 = vmatprep.mubr.f32.mxu0 %v575
    %763 = vmatmul.mubr.f32.gmra.mrb[0].mxu0 %v470
    %v764 = vpop.f32.mrb[0].mxu0
    %v765 = vadd.f32 0.0, %v764
    %v766 = vpop.f32.mrb[0].mxu0
    %767 = vmatprep.mubr.f32.mxu0 %v578
    %768 = vmatmul.mubr.f32.gmra.mrb[0].mxu0 %v472
    %v769 = vpop.f32.mrb[0].mxu0
    %v770 = vadd.f32 0.0, %v769
    %v771 = vpop.f32.mrb[0].mxu0
    %772 = vmatprep.mubr.f32.mxu0 %v581
    %773 = vmatmul.mubr.f32.gmra.mrb[0].mxu0 %v474
    %v774 = vpop.f32.mrb[0].mxu0
    %v775 = vadd.f32 0.0, %v774
    %v776 = vpop.f32.mrb[0].mxu0
    %777 = vmatprep.mubr.f32.mxu0 %v584
    %778 = vmatmul.mubr.f32.gmra.mrb[0].mxu0 %v476
    %v779 = vpop.f32.mrb[0].mxu0
    %v780 = vadd.f32 0.0, %v779
    %v781 = vpop.f32.mrb[0].mxu0
    %782 = vmatprep.mubr.f32.mxu0 %v587
    %783 = vmatmul.mubr.f32.gmra.mrb[0].mxu0 %v478
    %v784 = vpop.f32.mrb[0].mxu0
    %v785 = vadd.f32 0.0, %v784
    %v786 = vpop.f32.mrb[0].mxu0
    %787 = vmatprep.mubr.f32.mxu0 %v590
    %788 = vmatmul.mubr.f32.gmra.mrb[0].mxu0 %v480
    %v789 = vpop.f32.mrb[0].mxu0
    %v790 = vadd.f32 0.0, %v789
    %v791 = vpop.f32.mrb[0].mxu0
    %792 = vmatprep.mubr.f32.mxu0 %v593
    %793 = vmatmul.mubr.f32.gmra.mrb[0].mxu0 %v482
    %v794 = vpop.f32.mrb[0].mxu0
    %v795 = vadd.f32 0.0, %v794
    %v796 = vpop.f32.mrb[0].mxu0
    %797 = vmatprep.mubr.f32.mxu0 %v596
    %798 = vmatmul.mubr.f32.gmra.mrb[0].mxu0 %v484
    %v799 = vpop.f32.mrb[0].mxu0
    %v800 = vadd.f32 0.0, %v799
    %v801 = vpop.f32.mrb[0].mxu0
    %802 = vmatprep.mubr.f32.mxu0 %v599
    %803 = vmatmul.mubr.f32.gmra.mrb[0].mxu0 %v486
    %v804 = vpop.f32.mrb[0].mxu0
    %v805 = vadd.f32 0.0, %v804
    %v806 = vpop.f32.mrb[0].mxu0
    %807 = vmatprep.mubr.f32.mxu0 %v602
    %808 = vmatmul.mubr.f32.gmra.mrb[0].mxu0 %v488
    %v809 = vpop.f32.mrb[0].mxu0
    %v810 = vadd.f32 0.0, %v809
    %v811 = vpop.f32.mrb[0].mxu0
    %812 = vmatprep.mubr.f32.mxu0 %v605
    %813 = vmatmul.mubr.f32.gmra.mrb[0].mxu0 %v490
    %v814 = vpop.f32.mrb[0].mxu0
    %v815 = vadd.f32 0.0, %v814
    %v816 = vpop.f32.mrb[0].mxu0
    %817 = vmatprep.mubr.f32.mxu0 %v608
    %818 = vmatmul.mubr.f32.gmra.mrb[0].mxu0 %v492
    %v819 = vpop.f32.mrb[0].mxu0
    %v820 = vadd.f32 0.0, %v819
    %v821 = vpop.f32.mrb[0].mxu0
    %822 = vmatprep.mubr.f32.mxu0 %v611
    %823 = vmatmul.mubr.f32.gmra.mrb[0].mxu0 %v494
    %v824 = vpop.f32.mrb[0].mxu0
    %v825 = vadd.f32 0.0, %v824
    %v826 = vpop.f32.mrb[0].mxu0
    %827 = vmatprep.mubr.f32.mxu0 %v614
    %828 = vmatmul.mubr.f32.gmra.mrb[0].mxu0 %v496
    %v829 = vpop.f32.mrb[0].mxu0
    %v830 = vadd.f32 0.0, %v829
    %v831 = vpop.f32.mrb[0].mxu0
    %832 = vmatprep.mubr.f32.mxu0 %v617
    %833 = vmatmul.mubr.f32.gmra.mrb[0].mxu0 %v498
    %v834 = vpop.f32.mrb[0].mxu0
    %v835 = vadd.f32 0.0, %v834
    %v836 = vpop.f32.mrb[0].mxu0
    %837 = vmatprep.mubr.f32.mxu0 %v620
    %838 = vmatmul.mubr.f32.gmra.mrb[0].mxu0 %v500
    %v839 = vpop.f32.mrb[0].mxu0
    %v840 = vadd.f32 0.0, %v839
    %v841 = vpop.f32.mrb[0].mxu0
    %842 = vmatprep.mubr.f32.mxu0 %v623
    %843 = vmatmul.mubr.f32.gmra.mrb[0].mxu0 %v502
    %v844 = vpop.f32.mrb[0].mxu0
    %v845 = vadd.f32 0.0, %v844
    %v846 = vpop.f32.mrb[0].mxu0
    %847 = vmatprep.mubr.f32.mxu0 %v626
    %848 = vmatmul.mubr.f32.gmra.mrb[0].mxu0 %v504
    %v849 = vpop.f32.mrb[0].mxu0
    %v850 = vadd.f32 0.0, %v849
    %v851 = vpop.f32.mrb[0].mxu0
    %852 = vdwg.mxu0
    %853 = vxpose.xlu0.b32.start [1/16] %v695, 128
    %854 = vxpose.xlu0.b32.cont [2/16] %v700, 128
    %855 = vxpose.xlu0.b32.cont [3/16] 0.0, 128
    %856 = vxpose.xlu0.b32.cont [4/16] 0.0, 128
    %857 = vxpose.xlu0.b32.cont [5/16] 0.0, 128
    %858 = vxpose.xlu0.b32.cont [6/16] 0.0, 128
    %859 = vxpose.xlu0.b32.cont [7/16] 0.0, 128
    %860 = vxpose.xlu0.b32.cont [8/16] 0.0, 128
    %861 = vxpose.xlu0.b32.cont [9/16] 0.0, 128
    %862 = vxpose.xlu0.b32.cont [10/16] 0.0, 128
    %863 = vxpose.xlu0.b32.cont [11/16] 0.0, 128
    %864 = vxpose.xlu0.b32.cont [12/16] 0.0, 128
    %865 = vxpose.xlu0.b32.cont [13/16] 0.0, 128
    %866 = vxpose.xlu0.b32.cont [14/16] 0.0, 128
    %867 = vxpose.xlu0.b32.cont [15/16] 0.0, 128
    %868 = vxpose.xlu0.b32.end [16/16] 0.0, 128
    %v869 = vpop.trf.xlu0
    %v870 = vpop.trf.xlu0
    %v871 = vpop.trf.xlu0
    %v872 = vpop.trf.xlu0
    %v873 = vpop.trf.xlu0
    %v874 = vpop.trf.xlu0
    %v875 = vpop.trf.xlu0
    %v876 = vpop.trf.xlu0
    %v877 = vpop.trf.xlu0
    %v878 = vpop.trf.xlu0
    %v879 = vpop.trf.xlu0
    %v880 = vpop.trf.xlu0
    %v881 = vpop.trf.xlu0
    %v882 = vpop.trf.xlu0
    %v883 = vpop.trf.xlu0
    %v884 = vpop.trf.xlu0
    %885 = vxpose.xlu0.b32.start [1/16] %v705, 128
    %886 = vxpose.xlu0.b32.cont [2/16] %v710, 128
    %887 = vxpose.xlu0.b32.cont [3/16] 0.0, 128
    %888 = vxpose.xlu0.b32.cont [4/16] 0.0, 128
    %889 = vxpose.xlu0.b32.cont [5/16] 0.0, 128
    %890 = vxpose.xlu0.b32.cont [6/16] 0.0, 128
    %891 = vxpose.xlu0.b32.cont [7/16] 0.0, 128
    %892 = vxpose.xlu0.b32.cont [8/16] 0.0, 128
    %893 = vxpose.xlu0.b32.cont [9/16] 0.0, 128
    %894 = vxpose.xlu0.b32.cont [10/16] 0.0, 128
    %895 = vxpose.xlu0.b32.cont [11/16] 0.0, 128
    %896 = vxpose.xlu0.b32.cont [12/16] 0.0, 128
    %897 = vxpose.xlu0.b32.cont [13/16] 0.0, 128
    %898 = vxpose.xlu0.b32.cont [14/16] 0.0, 128
    %899 = vxpose.xlu0.b32.cont [15/16] 0.0, 128
    %900 = vxpose.xlu0.b32.end [16/16] 0.0, 128
    %v901 = vpop.trf.xlu0
    %v902 = vpop.trf.xlu0
    %v903 = vpop.trf.xlu0
    %v904 = vpop.trf.xlu0
    %v905 = vpop.trf.xlu0
    %v906 = vpop.trf.xlu0
    %v907 = vpop.trf.xlu0
    %v908 = vpop.trf.xlu0
    %v909 = vpop.trf.xlu0
    %v910 = vpop.trf.xlu0
    %v911 = vpop.trf.xlu0
    %v912 = vpop.trf.xlu0
    %v913 = vpop.trf.xlu0
    %v914 = vpop.trf.xlu0
    %v915 = vpop.trf.xlu0
    %v916 = vpop.trf.xlu0
    %917 = vxpose.xlu0.b32.start [1/16] %v715, 128
    %918 = vxpose.xlu0.b32.cont [2/16] %v720, 128
    %919 = vxpose.xlu0.b32.cont [3/16] 0.0, 128
    %920 = vxpose.xlu0.b32.cont [4/16] 0.0, 128
    %921 = vxpose.xlu0.b32.cont [5/16] 0.0, 128
    %922 = vxpose.xlu0.b32.cont [6/16] 0.0, 128
    %923 = vxpose.xlu0.b32.cont [7/16] 0.0, 128
    %924 = vxpose.xlu0.b32.cont [8/16] 0.0, 128
    %925 = vxpose.xlu0.b32.cont [9/16] 0.0, 128
    %926 = vxpose.xlu0.b32.cont [10/16] 0.0, 128
    %927 = vxpose.xlu0.b32.cont [11/16] 0.0, 128
    %928 = vxpose.xlu0.b32.cont [12/16] 0.0, 128
    %929 = vxpose.xlu0.b32.cont [13/16] 0.0, 128
    %930 = vxpose.xlu0.b32.cont [14/16] 0.0, 128
    %931 = vxpose.xlu0.b32.cont [15/16] 0.0, 128
    %932 = vxpose.xlu0.b32.end [16/16] 0.0, 128
    %v933 = vpop.trf.xlu0
    %v934 = vpop.trf.xlu0
    %v935 = vpop.trf.xlu0
    %v936 = vpop.trf.xlu0
    %v937 = vpop.trf.xlu0
    %v938 = vpop.trf.xlu0
    %v939 = vpop.trf.xlu0
    %v940 = vpop.trf.xlu0
    %v941 = vpop.trf.xlu0
    %v942 = vpop.trf.xlu0
    %v943 = vpop.trf.xlu0
    %v944 = vpop.trf.xlu0
    %v945 = vpop.trf.xlu0
    %v946 = vpop.trf.xlu0
    %v947 = vpop.trf.xlu0
    %v948 = vpop.trf.xlu0
    %949 = vxpose.xlu0.b32.start [1/16] %v725, 128
    %950 = vxpose.xlu0.b32.cont [2/16] %v730, 128
    %951 = vxpose.xlu0.b32.cont [3/16] 0.0, 128
    %952 = vxpose.xlu0.b32.cont [4/16] 0.0, 128
    %953 = vxpose.xlu0.b32.cont [5/16] 0.0, 128
    %954 = vxpose.xlu0.b32.cont [6/16] 0.0, 128
    %955 = vxpose.xlu0.b32.cont [7/16] 0.0, 128
    %956 = vxpose.xlu0.b32.cont [8/16] 0.0, 128
    %957 = vxpose.xlu0.b32.cont [9/16] 0.0, 128
    %958 = vxpose.xlu0.b32.cont [10/16] 0.0, 128
    %959 = vxpose.xlu0.b32.cont [11/16] 0.0, 128
    %960 = vxpose.xlu0.b32.cont [12/16] 0.0, 128
    %961 = vxpose.xlu0.b32.cont [13/16] 0.0, 128
    %962 = vxpose.xlu0.b32.cont [14/16] 0.0, 128
    %963 = vxpose.xlu0.b32.cont [15/16] 0.0, 128
    %964 = vxpose.xlu0.b32.end [16/16] 0.0, 128
    %v965 = vpop.trf.xlu0
    %v966 = vpop.trf.xlu0
    %v967 = vpop.trf.xlu0
    %v968 = vpop.trf.xlu0
    %v969 = vpop.trf.xlu0
    %v970 = vpop.trf.xlu0
    %v971 = vpop.trf.xlu0
    %v972 = vpop.trf.xlu0
    %v973 = vpop.trf.xlu0
    %v974 = vpop.trf.xlu0
    %v975 = vpop.trf.xlu0
    %v976 = vpop.trf.xlu0
    %v977 = vpop.trf.xlu0
    %v978 = vpop.trf.xlu0
    %v979 = vpop.trf.xlu0
    %v980 = vpop.trf.xlu0
    %981 = vxpose.xlu0.b32.start [1/16] %v735, 128
    %982 = vxpose.xlu0.b32.cont [2/16] %v740, 128
    %983 = vxpose.xlu0.b32.cont [3/16] 0.0, 128
    %984 = vxpose.xlu0.b32.cont [4/16] 0.0, 128
    %985 = vxpose.xlu0.b32.cont [5/16] 0.0, 128
    %986 = vxpose.xlu0.b32.cont [6/16] 0.0, 128
    %987 = vxpose.xlu0.b32.cont [7/16] 0.0, 128
    %988 = vxpose.xlu0.b32.cont [8/16] 0.0, 128
    %989 = vxpose.xlu0.b32.cont [9/16] 0.0, 128
    %990 = vxpose.xlu0.b32.cont [10/16] 0.0, 128
    %991 = vxpose.xlu0.b32.cont [11/16] 0.0, 128
    %992 = vxpose.xlu0.b32.cont [12/16] 0.0, 128
    %993 = vxpose.xlu0.b32.cont [13/16] 0.0, 128
    %994 = vxpose.xlu0.b32.cont [14/16] 0.0, 128
    %995 = vxpose.xlu0.b32.cont [15/16] 0.0, 128
    %996 = vxpose.xlu0.b32.end [16/16] 0.0, 128
    %v997 = vpop.trf.xlu0
    %v998 = vpop.trf.xlu0
    %v999 = vpop.trf.xlu0
    %v1000 = vpop.trf.xlu0
    %v1001 = vpop.trf.xlu0
    %v1002 = vpop.trf.xlu0
    %v1003 = vpop.trf.xlu0
    %v1004 = vpop.trf.xlu0
    %v1005 = vpop.trf.xlu0
    %v1006 = vpop.trf.xlu0
    %v1007 = vpop.trf.xlu0
    %v1008 = vpop.trf.xlu0
    %v1009 = vpop.trf.xlu0
    %v1010 = vpop.trf.xlu0
    %v1011 = vpop.trf.xlu0
    %v1012 = vpop.trf.xlu0
    %1013 = vxpose.xlu0.b32.start [1/16] %v745, 128
    %1014 = vxpose.xlu0.b32.cont [2/16] %v750, 128
    %1015 = vxpose.xlu0.b32.cont [3/16] 0.0, 128
    %1016 = vxpose.xlu0.b32.cont [4/16] 0.0, 128
    %1017 = vxpose.xlu0.b32.cont [5/16] 0.0, 128
    %1018 = vxpose.xlu0.b32.cont [6/16] 0.0, 128
    %1019 = vxpose.xlu0.b32.cont [7/16] 0.0, 128
    %1020 = vxpose.xlu0.b32.cont [8/16] 0.0, 128
    %1021 = vxpose.xlu0.b32.cont [9/16] 0.0, 128
    %1022 = vxpose.xlu0.b32.cont [10/16] 0.0, 128
    %1023 = vxpose.xlu0.b32.cont [11/16] 0.0, 128
    %1024 = vxpose.xlu0.b32.cont [12/16] 0.0, 128
    %1025 = vxpose.xlu0.b32.cont [13/16] 0.0, 128
    %1026 = vxpose.xlu0.b32.cont [14/16] 0.0, 128
    %1027 = vxpose.xlu0.b32.cont [15/16] 0.0, 128
    %1028 = vxpose.xlu0.b32.end [16/16] 0.0, 128
    %v1029 = vpop.trf.xlu0
    %v1030 = vpop.trf.xlu0
    %v1031 = vpop.trf.xlu0
    %v1032 = vpop.trf.xlu0
    %v1033 = vpop.trf.xlu0
    %v1034 = vpop.trf.xlu0
    %v1035 = vpop.trf.xlu0
    %v1036 = vpop.trf.xlu0
    %v1037 = vpop.trf.xlu0
    %v1038 = vpop.trf.xlu0
    %v1039 = vpop.trf.xlu0
    %v1040 = vpop.trf.xlu0
    %v1041 = vpop.trf.xlu0
    %v1042 = vpop.trf.xlu0
    %v1043 = vpop.trf.xlu0
    %v1044 = vpop.trf.xlu0
    %1045 = vxpose.xlu0.b32.start [1/16] %v755, 128
    %1046 = vxpose.xlu0.b32.cont [2/16] %v760, 128
    %1047 = vxpose.xlu0.b32.cont [3/16] 0.0, 128
    %1048 = vxpose.xlu0.b32.cont [4/16] 0.0, 128
    %1049 = vxpose.xlu0.b32.cont [5/16] 0.0, 128
    %1050 = vxpose.xlu0.b32.cont [6/16] 0.0, 128
    %1051 = vxpose.xlu0.b32.cont [7/16] 0.0, 128
    %1052 = vxpose.xlu0.b32.cont [8/16] 0.0, 128
    %1053 = vxpose.xlu0.b32.cont [9/16] 0.0, 128
    %1054 = vxpose.xlu0.b32.cont [10/16] 0.0, 128
    %1055 = vxpose.xlu0.b32.cont [11/16] 0.0, 128
    %1056 = vxpose.xlu0.b32.cont [12/16] 0.0, 128
    %1057 = vxpose.xlu0.b32.cont [13/16] 0.0, 128
    %1058 = vxpose.xlu0.b32.cont [14/16] 0.0, 128
    %1059 = vxpose.xlu0.b32.cont [15/16] 0.0, 128
    %1060 = vxpose.xlu0.b32.end [16/16] 0.0, 128
    %v1061 = vpop.trf.xlu0
    %v1062 = vpop.trf.xlu0
    %v1063 = vpop.trf.xlu0
    %v1064 = vpop.trf.xlu0
    %v1065 = vpop.trf.xlu0
    %v1066 = vpop.trf.xlu0
    %v1067 = vpop.trf.xlu0
    %v1068 = vpop.trf.xlu0
    %v1069 = vpop.trf.xlu0
    %v1070 = vpop.trf.xlu0
    %v1071 = vpop.trf.xlu0
    %v1072 = vpop.trf.xlu0
    %v1073 = vpop.trf.xlu0
    %v1074 = vpop.trf.xlu0
    %v1075 = vpop.trf.xlu0
    %v1076 = vpop.trf.xlu0
    %1077 = vxpose.xlu0.b32.start [1/16] %v765, 128
    %1078 = vxpose.xlu0.b32.cont [2/16] %v770, 128
    %1079 = vxpose.xlu0.b32.cont [3/16] 0.0, 128
    %1080 = vxpose.xlu0.b32.cont [4/16] 0.0, 128
    %1081 = vxpose.xlu0.b32.cont [5/16] 0.0, 128
    %1082 = vxpose.xlu0.b32.cont [6/16] 0.0, 128
    %1083 = vxpose.xlu0.b32.cont [7/16] 0.0, 128
    %1084 = vxpose.xlu0.b32.cont [8/16] 0.0, 128
    %1085 = vxpose.xlu0.b32.cont [9/16] 0.0, 128
    %1086 = vxpose.xlu0.b32.cont [10/16] 0.0, 128
    %1087 = vxpose.xlu0.b32.cont [11/16] 0.0, 128
    %1088 = vxpose.xlu0.b32.cont [12/16] 0.0, 128
    %1089 = vxpose.xlu0.b32.cont [13/16] 0.0, 128
    %1090 = vxpose.xlu0.b32.cont [14/16] 0.0, 128
    %1091 = vxpose.xlu0.b32.cont [15/16] 0.0, 128
    %1092 = vxpose.xlu0.b32.end [16/16] 0.0, 128
    %v1093 = vpop.trf.xlu0
    %v1094 = vpop.trf.xlu0
    %v1095 = vpop.trf.xlu0
    %v1096 = vpop.trf.xlu0
    %v1097 = vpop.trf.xlu0
    %v1098 = vpop.trf.xlu0
    %v1099 = vpop.trf.xlu0
    %v1100 = vpop.trf.xlu0
    %v1101 = vpop.trf.xlu0
    %v1102 = vpop.trf.xlu0
    %v1103 = vpop.trf.xlu0
    %v1104 = vpop.trf.xlu0
    %v1105 = vpop.trf.xlu0
    %v1106 = vpop.trf.xlu0
    %v1107 = vpop.trf.xlu0
    %v1108 = vpop.trf.xlu0
    %1109 = vxpose.xlu0.b32.start [1/16] %v775, 128
    %1110 = vxpose.xlu0.b32.cont [2/16] %v780, 128
    %1111 = vxpose.xlu0.b32.cont [3/16] 0.0, 128
    %1112 = vxpose.xlu0.b32.cont [4/16] 0.0, 128
    %1113 = vxpose.xlu0.b32.cont [5/16] 0.0, 128
    %1114 = vxpose.xlu0.b32.cont [6/16] 0.0, 128
    %1115 = vxpose.xlu0.b32.cont [7/16] 0.0, 128
    %1116 = vxpose.xlu0.b32.cont [8/16] 0.0, 128
    %1117 = vxpose.xlu0.b32.cont [9/16] 0.0, 128
    %1118 = vxpose.xlu0.b32.cont [10/16] 0.0, 128
    %1119 = vxpose.xlu0.b32.cont [11/16] 0.0, 128
    %1120 = vxpose.xlu0.b32.cont [12/16] 0.0, 128
    %1121 = vxpose.xlu0.b32.cont [13/16] 0.0, 128
    %1122 = vxpose.xlu0.b32.cont [14/16] 0.0, 128
    %1123 = vxpose.xlu0.b32.cont [15/16] 0.0, 128
    %1124 = vxpose.xlu0.b32.end [16/16] 0.0, 128
    %v1125 = vpop.trf.xlu0
    %v1126 = vpop.trf.xlu0
    %v1127 = vpop.trf.xlu0
    %v1128 = vpop.trf.xlu0
    %v1129 = vpop.trf.xlu0
    %v1130 = vpop.trf.xlu0
    %v1131 = vpop.trf.xlu0
    %v1132 = vpop.trf.xlu0
    %v1133 = vpop.trf.xlu0
    %v1134 = vpop.trf.xlu0
    %v1135 = vpop.trf.xlu0
    %v1136 = vpop.trf.xlu0
    %v1137 = vpop.trf.xlu0
    %v1138 = vpop.trf.xlu0
    %v1139 = vpop.trf.xlu0
    %v1140 = vpop.trf.xlu0
    %1141 = vxpose.xlu0.b32.start [1/16] %v785, 128
    %1142 = vxpose.xlu0.b32.cont [2/16] %v790, 128
    %1143 = vxpose.xlu0.b32.cont [3/16] 0.0, 128
    %1144 = vxpose.xlu0.b32.cont [4/16] 0.0, 128
    %1145 = vxpose.xlu0.b32.cont [5/16] 0.0, 128
    %1146 = vxpose.xlu0.b32.cont [6/16] 0.0, 128
    %1147 = vxpose.xlu0.b32.cont [7/16] 0.0, 128
    %1148 = vxpose.xlu0.b32.cont [8/16] 0.0, 128
    %1149 = vxpose.xlu0.b32.cont [9/16] 0.0, 128
    %1150 = vxpose.xlu0.b32.cont [10/16] 0.0, 128
    %1151 = vxpose.xlu0.b32.cont [11/16] 0.0, 128
    %1152 = vxpose.xlu0.b32.cont [12/16] 0.0, 128
    %1153 = vxpose.xlu0.b32.cont [13/16] 0.0, 128
    %1154 = vxpose.xlu0.b32.cont [14/16] 0.0, 128
    %1155 = vxpose.xlu0.b32.cont [15/16] 0.0, 128
    %1156 = vxpose.xlu0.b32.end [16/16] 0.0, 128
    %v1157 = vpop.trf.xlu0
    %v1158 = vpop.trf.xlu0
    %v1159 = vpop.trf.xlu0
    %v1160 = vpop.trf.xlu0
    %v1161 = vpop.trf.xlu0
    %v1162 = vpop.trf.xlu0
    %v1163 = vpop.trf.xlu0
    %v1164 = vpop.trf.xlu0
    %v1165 = vpop.trf.xlu0
    %v1166 = vpop.trf.xlu0
    %v1167 = vpop.trf.xlu0
    %v1168 = vpop.trf.xlu0
    %v1169 = vpop.trf.xlu0
    %v1170 = vpop.trf.xlu0
    %v1171 = vpop.trf.xlu0
    %v1172 = vpop.trf.xlu0
    %1173 = vxpose.xlu0.b32.start [1/16] %v795, 128
    %1174 = vxpose.xlu0.b32.cont [2/16] %v800, 128
    %1175 = vxpose.xlu0.b32.cont [3/16] 0.0, 128
    %1176 = vxpose.xlu0.b32.cont [4/16] 0.0, 128
    %1177 = vxpose.xlu0.b32.cont [5/16] 0.0, 128
    %1178 = vxpose.xlu0.b32.cont [6/16] 0.0, 128
    %1179 = vxpose.xlu0.b32.cont [7/16] 0.0, 128
    %1180 = vxpose.xlu0.b32.cont [8/16] 0.0, 128
    %1181 = vxpose.xlu0.b32.cont [9/16] 0.0, 128
    %1182 = vxpose.xlu0.b32.cont [10/16] 0.0, 128
    %1183 = vxpose.xlu0.b32.cont [11/16] 0.0, 128
    %1184 = vxpose.xlu0.b32.cont [12/16] 0.0, 128
    %1185 = vxpose.xlu0.b32.cont [13/16] 0.0, 128
    %1186 = vxpose.xlu0.b32.cont [14/16] 0.0, 128
    %1187 = vxpose.xlu0.b32.cont [15/16] 0.0, 128
    %1188 = vxpose.xlu0.b32.end [16/16] 0.0, 128
    %v1189 = vpop.trf.xlu0
    %v1190 = vpop.trf.xlu0
    %v1191 = vpop.trf.xlu0
    %v1192 = vpop.trf.xlu0
    %v1193 = vpop.trf.xlu0
    %v1194 = vpop.trf.xlu0
    %v1195 = vpop.trf.xlu0
    %v1196 = vpop.trf.xlu0
    %v1197 = vpop.trf.xlu0
    %v1198 = vpop.trf.xlu0
    %v1199 = vpop.trf.xlu0
    %v1200 = vpop.trf.xlu0
    %v1201 = vpop.trf.xlu0
    %v1202 = vpop.trf.xlu0
    %v1203 = vpop.trf.xlu0
    %v1204 = vpop.trf.xlu0
    %1205 = vxpose.xlu0.b32.start [1/16] %v805, 128
    %1206 = vxpose.xlu0.b32.cont [2/16] %v810, 128
    %1207 = vxpose.xlu0.b32.cont [3/16] 0.0, 128
    %1208 = vxpose.xlu0.b32.cont [4/16] 0.0, 128
    %1209 = vxpose.xlu0.b32.cont [5/16] 0.0, 128
    %1210 = vxpose.xlu0.b32.cont [6/16] 0.0, 128
    %1211 = vxpose.xlu0.b32.cont [7/16] 0.0, 128
    %1212 = vxpose.xlu0.b32.cont [8/16] 0.0, 128
    %1213 = vxpose.xlu0.b32.cont [9/16] 0.0, 128
    %1214 = vxpose.xlu0.b32.cont [10/16] 0.0, 128
    %1215 = vxpose.xlu0.b32.cont [11/16] 0.0, 128
    %1216 = vxpose.xlu0.b32.cont [12/16] 0.0, 128
    %1217 = vxpose.xlu0.b32.cont [13/16] 0.0, 128
    %1218 = vxpose.xlu0.b32.cont [14/16] 0.0, 128
    %1219 = vxpose.xlu0.b32.cont [15/16] 0.0, 128
    %1220 = vxpose.xlu0.b32.end [16/16] 0.0, 128
    %v1221 = vpop.trf.xlu0
    %v1222 = vpop.trf.xlu0
    %v1223 = vpop.trf.xlu0
    %v1224 = vpop.trf.xlu0
    %v1225 = vpop.trf.xlu0
    %v1226 = vpop.trf.xlu0
    %v1227 = vpop.trf.xlu0
    %v1228 = vpop.trf.xlu0
    %v1229 = vpop.trf.xlu0
    %v1230 = vpop.trf.xlu0
    %v1231 = vpop.trf.xlu0
    %v1232 = vpop.trf.xlu0
    %v1233 = vpop.trf.xlu0
    %v1234 = vpop.trf.xlu0
    %v1235 = vpop.trf.xlu0
    %v1236 = vpop.trf.xlu0
    %1237 = vxpose.xlu0.b32.start [1/16] %v815, 128
    %1238 = vxpose.xlu0.b32.cont [2/16] %v820, 128
    %1239 = vxpose.xlu0.b32.cont [3/16] 0.0, 128
    %1240 = vxpose.xlu0.b32.cont [4/16] 0.0, 128
    %1241 = vxpose.xlu0.b32.cont [5/16] 0.0, 128
    %1242 = vxpose.xlu0.b32.cont [6/16] 0.0, 128
    %1243 = vxpose.xlu0.b32.cont [7/16] 0.0, 128
    %1244 = vxpose.xlu0.b32.cont [8/16] 0.0, 128
    %1245 = vxpose.xlu0.b32.cont [9/16] 0.0, 128
    %1246 = vxpose.xlu0.b32.cont [10/16] 0.0, 128
    %1247 = vxpose.xlu0.b32.cont [11/16] 0.0, 128
    %1248 = vxpose.xlu0.b32.cont [12/16] 0.0, 128
    %1249 = vxpose.xlu0.b32.cont [13/16] 0.0, 128
    %1250 = vxpose.xlu0.b32.cont [14/16] 0.0, 128
    %1251 = vxpose.xlu0.b32.cont [15/16] 0.0, 128
    %1252 = vxpose.xlu0.b32.end [16/16] 0.0, 128
    %v1253 = vpop.trf.xlu0
    %v1254 = vpop.trf.xlu0
    %v1255 = vpop.trf.xlu0
    %v1256 = vpop.trf.xlu0
    %v1257 = vpop.trf.xlu0
    %v1258 = vpop.trf.xlu0
    %v1259 = vpop.trf.xlu0
    %v1260 = vpop.trf.xlu0
    %v1261 = vpop.trf.xlu0
    %v1262 = vpop.trf.xlu0
    %v1263 = vpop.trf.xlu0
    %v1264 = vpop.trf.xlu0
    %v1265 = vpop.trf.xlu0
    %v1266 = vpop.trf.xlu0
    %v1267 = vpop.trf.xlu0
    %v1268 = vpop.trf.xlu0
    %1269 = vxpose.xlu0.b32.start [1/16] %v825, 128
    %1270 = vxpose.xlu0.b32.cont [2/16] %v830, 128
    %1271 = vxpose.xlu0.b32.cont [3/16] 0.0, 128
    %1272 = vxpose.xlu0.b32.cont [4/16] 0.0, 128
    %1273 = vxpose.xlu0.b32.cont [5/16] 0.0, 128
    %1274 = vxpose.xlu0.b32.cont [6/16] 0.0, 128
    %1275 = vxpose.xlu0.b32.cont [7/16] 0.0, 128
    %1276 = vxpose.xlu0.b32.cont [8/16] 0.0, 128
    %1277 = vxpose.xlu0.b32.cont [9/16] 0.0, 128
    %1278 = vxpose.xlu0.b32.cont [10/16] 0.0, 128
    %1279 = vxpose.xlu0.b32.cont [11/16] 0.0, 128
    %1280 = vxpose.xlu0.b32.cont [12/16] 0.0, 128
    %1281 = vxpose.xlu0.b32.cont [13/16] 0.0, 128
    %1282 = vxpose.xlu0.b32.cont [14/16] 0.0, 128
    %1283 = vxpose.xlu0.b32.cont [15/16] 0.0, 128
    %1284 = vxpose.xlu0.b32.end [16/16] 0.0, 128
    %v1285 = vpop.trf.xlu0
    %v1286 = vpop.trf.xlu0
    %v1287 = vpop.trf.xlu0
    %v1288 = vpop.trf.xlu0
    %v1289 = vpop.trf.xlu0
    %v1290 = vpop.trf.xlu0
    %v1291 = vpop.trf.xlu0
    %v1292 = vpop.trf.xlu0
    %v1293 = vpop.trf.xlu0
    %v1294 = vpop.trf.xlu0
    %v1295 = vpop.trf.xlu0
    %v1296 = vpop.trf.xlu0
    %v1297 = vpop.trf.xlu0
    %v1298 = vpop.trf.xlu0
    %v1299 = vpop.trf.xlu0
    %v1300 = vpop.trf.xlu0
    %1301 = vxpose.xlu0.b32.start [1/16] %v835, 128
    %1302 = vxpose.xlu0.b32.cont [2/16] %v840, 128
    %1303 = vxpose.xlu0.b32.cont [3/16] 0.0, 128
    %1304 = vxpose.xlu0.b32.cont [4/16] 0.0, 128
    %1305 = vxpose.xlu0.b32.cont [5/16] 0.0, 128
    %1306 = vxpose.xlu0.b32.cont [6/16] 0.0, 128
    %1307 = vxpose.xlu0.b32.cont [7/16] 0.0, 128
    %1308 = vxpose.xlu0.b32.cont [8/16] 0.0, 128
    %1309 = vxpose.xlu0.b32.cont [9/16] 0.0, 128
    %1310 = vxpose.xlu0.b32.cont [10/16] 0.0, 128
    %1311 = vxpose.xlu0.b32.cont [11/16] 0.0, 128
    %1312 = vxpose.xlu0.b32.cont [12/16] 0.0, 128
    %1313 = vxpose.xlu0.b32.cont [13/16] 0.0, 128
    %1314 = vxpose.xlu0.b32.cont [14/16] 0.0, 128
    %1315 = vxpose.xlu0.b32.cont [15/16] 0.0, 128
    %1316 = vxpose.xlu0.b32.end [16/16] 0.0, 128
    %v1317 = vpop.trf.xlu0
    %v1318 = vpop.trf.xlu0
    %v1319 = vpop.trf.xlu0
    %v1320 = vpop.trf.xlu0
    %v1321 = vpop.trf.xlu0
    %v1322 = vpop.trf.xlu0
    %v1323 = vpop.trf.xlu0
    %v1324 = vpop.trf.xlu0
    %v1325 = vpop.trf.xlu0
    %v1326 = vpop.trf.xlu0
    %v1327 = vpop.trf.xlu0
    %v1328 = vpop.trf.xlu0
    %v1329 = vpop.trf.xlu0
    %v1330 = vpop.trf.xlu0
    %v1331 = vpop.trf.xlu0
    %v1332 = vpop.trf.xlu0
    %1333 = vxpose.xlu0.b32.start [1/16] %v845, 128
    %1334 = vxpose.xlu0.b32.cont [2/16] %v850, 128
    %1335 = vxpose.xlu0.b32.cont [3/16] 0.0, 128
    %1336 = vxpose.xlu0.b32.cont [4/16] 0.0, 128
    %1337 = vxpose.xlu0.b32.cont [5/16] 0.0, 128
    %1338 = vxpose.xlu0.b32.cont [6/16] 0.0, 128
    %1339 = vxpose.xlu0.b32.cont [7/16] 0.0, 128
    %1340 = vxpose.xlu0.b32.cont [8/16] 0.0, 128
    %1341 = vxpose.xlu0.b32.cont [9/16] 0.0, 128
    %1342 = vxpose.xlu0.b32.cont [10/16] 0.0, 128
    %1343 = vxpose.xlu0.b32.cont [11/16] 0.0, 128
    %1344 = vxpose.xlu0.b32.cont [12/16] 0.0, 128
    %1345 = vxpose.xlu0.b32.cont [13/16] 0.0, 128
    %1346 = vxpose.xlu0.b32.cont [14/16] 0.0, 128
    %1347 = vxpose.xlu0.b32.cont [15/16] 0.0, 128
    %1348 = vxpose.xlu0.b32.end [16/16] 0.0, 128
    %v1349 = vpop.trf.xlu0
    %v1350 = vpop.trf.xlu0
    %v1351 = vpop.trf.xlu0
    %v1352 = vpop.trf.xlu0
    %v1353 = vpop.trf.xlu0
    %v1354 = vpop.trf.xlu0
    %v1355 = vpop.trf.xlu0
    %v1356 = vpop.trf.xlu0
    %v1357 = vpop.trf.xlu0
    %v1358 = vpop.trf.xlu0
    %v1359 = vpop.trf.xlu0
    %v1360 = vpop.trf.xlu0
    %v1361 = vpop.trf.xlu0
    %v1362 = vpop.trf.xlu0
    %v1363 = vpop.trf.xlu0
    %v1364 = vpop.trf.xlu0
    %v1367 = vcombine.high %v66, %v66
    %v1369 = vunpack.c.l.s4 1966171168
    %v1370 = vunpack.c.0.s8 %v1369
    %v1371 = vlaneseq
    %v1372 = vshrl.u32 %v1371, 7
    %v1373 = vsub.s32 %v1370, %v1372
    %v1374 = vrot.slane %v66, %v1373
    %v1376 = vunpack.c.l.s4 1966171168
    %v1377 = vunpack.c.0.s8 %v1376
    %v1378 = vlaneseq
    %v1379 = vshrl.u32 %v1378, 7
    %v1380 = vsub.s32 %v1377, %v1379
    %v1381 = vrot.slane %v1367, %v1380
    %v1382 = vcombine.high %v1374, %v1374
    %v1383 = vcombine.high %v1381, %v1381
    %v1385 = vunpack.c.l.s4 1966171168
    %v1386 = vunpack.c.0.s8 %v1385
    %v1387 = vlaneseq
    %v1388 = vshrl.u32 %v1387, 7
    %v1389 = vsub.s32 %v1386, %v1388
    %v1390 = vrot.slane %v1374, %v1389
    %v1392 = vunpack.c.l.s4 1966171168
    %v1393 = vunpack.c.0.s8 %v1392
    %v1394 = vlaneseq
    %v1395 = vshrl.u32 %v1394, 7
    %v1396 = vsub.s32 %v1393, %v1395
    %v1397 = vrot.slane %v1381, %v1396
    %v1399 = vunpack.c.l.s4 1966171168
    %v1400 = vunpack.c.0.s8 %v1399
    %v1401 = vlaneseq
    %v1402 = vshrl.u32 %v1401, 7
    %v1403 = vsub.s32 %v1400, %v1402
    %v1404 = vrot.slane %v1382, %v1403
    %v1406 = vunpack.c.l.s4 1966171168
    %v1407 = vunpack.c.0.s8 %v1406
    %v1408 = vlaneseq
    %v1409 = vshrl.u32 %v1408, 7
    %v1410 = vsub.s32 %v1407, %v1409
    %v1411 = vrot.slane %v1383, %v1410
    %v1412 = vcombine.high %v1390, %v1390
    %v1413 = vcombine.high %v1397, %v1397
    %v1414 = vcombine.high %v1404, %v1404
    %v1415 = vcombine.high %v1411, %v1411
    %v1416 = vcombine.high %v67, %v67
    %v1418 = vunpack.c.l.s4 1966171168
    %v1419 = vunpack.c.0.s8 %v1418
    %v1420 = vlaneseq
    %v1421 = vshrl.u32 %v1420, 7
    %v1422 = vsub.s32 %v1419, %v1421
    %v1423 = vrot.slane %v67, %v1422
    %v1425 = vunpack.c.l.s4 1966171168
    %v1426 = vunpack.c.0.s8 %v1425
    %v1427 = vlaneseq
    %v1428 = vshrl.u32 %v1427, 7
    %v1429 = vsub.s32 %v1426, %v1428
    %v1430 = vrot.slane %v1416, %v1429
    %v1431 = vcombine.high %v1423, %v1423
    %v1432 = vcombine.high %v1430, %v1430
    %v1434 = vunpack.c.l.s4 1966171168
    %v1435 = vunpack.c.0.s8 %v1434
    %v1436 = vlaneseq
    %v1437 = vshrl.u32 %v1436, 7
    %v1438 = vsub.s32 %v1435, %v1437
    %v1439 = vrot.slane %v1423, %v1438
    %v1441 = vunpack.c.l.s4 1966171168
    %v1442 = vunpack.c.0.s8 %v1441
    %v1443 = vlaneseq
    %v1444 = vshrl.u32 %v1443, 7
    %v1445 = vsub.s32 %v1442, %v1444
    %v1446 = vrot.slane %v1430, %v1445
    %v1448 = vunpack.c.l.s4 1966171168
    %v1449 = vunpack.c.0.s8 %v1448
    %v1450 = vlaneseq
    %v1451 = vshrl.u32 %v1450, 7
    %v1452 = vsub.s32 %v1449, %v1451
    %v1453 = vrot.slane %v1431, %v1452
    %v1455 = vunpack.c.l.s4 1966171168
    %v1456 = vunpack.c.0.s8 %v1455
    %v1457 = vlaneseq
    %v1458 = vshrl.u32 %v1457, 7
    %v1459 = vsub.s32 %v1456, %v1458
    %v1460 = vrot.slane %v1432, %v1459
    %v1461 = vcombine.high %v1439, %v1439
    %v1462 = vcombine.high %v1446, %v1446
    %v1463 = vcombine.high %v1453, %v1453
    %v1464 = vcombine.high %v1460, %v1460
    %v1465 = vlaneseq
    %v1466 = vshrl.u32 %v1465, 7
    %v1467 = vsub.s32 0, %v1466
    %v1468 = vrot.slane %v1390, %v1467
    %v1469 = vlaneseq
    %v1470 = vshrl.u32 %v1469, 7
    %v1471 = vsub.s32 0, %v1470
    %v1472 = vrot.slane %v1404, %v1471
    %v1473 = vlaneseq
    %v1474 = vshrl.u32 %v1473, 7
    %v1475 = vsub.s32 0, %v1474
    %v1476 = vrot.slane %v1412, %v1475
    %v1477 = vlaneseq
    %v1478 = vshrl.u32 %v1477, 7
    %v1479 = vsub.s32 0, %v1478
    %v1480 = vrot.slane %v1414, %v1479
    %v1481 = vlaneseq
    %v1482 = vshrl.u32 %v1481, 7
    %v1483 = vsub.s32 0, %v1482
    %v1484 = vrot.slane %v1397, %v1483
    %v1485 = vlaneseq
    %v1486 = vshrl.u32 %v1485, 7
    %v1487 = vsub.s32 0, %v1486
    %v1488 = vrot.slane %v1411, %v1487
    %v1489 = vlaneseq
    %v1490 = vshrl.u32 %v1489, 7
    %v1491 = vsub.s32 0, %v1490
    %v1492 = vrot.slane %v1413, %v1491
    %v1493 = vlaneseq
    %v1494 = vshrl.u32 %v1493, 7
    %v1495 = vsub.s32 0, %v1494
    %v1496 = vrot.slane %v1415, %v1495
    %v1497 = vlaneseq
    %v1498 = vshrl.u32 %v1497, 7
    %v1499 = vsub.s32 0, %v1498
    %v1500 = vrot.slane %v1439, %v1499
    %v1501 = vlaneseq
    %v1502 = vshrl.u32 %v1501, 7
    %v1503 = vsub.s32 0, %v1502
    %v1504 = vrot.slane %v1453, %v1503
    %v1505 = vlaneseq
    %v1506 = vshrl.u32 %v1505, 7
    %v1507 = vsub.s32 0, %v1506
    %v1508 = vrot.slane %v1461, %v1507
    %v1509 = vlaneseq
    %v1510 = vshrl.u32 %v1509, 7
    %v1511 = vsub.s32 0, %v1510
    %v1512 = vrot.slane %v1463, %v1511
    %v1513 = vlaneseq
    %v1514 = vshrl.u32 %v1513, 7
    %v1515 = vsub.s32 0, %v1514
    %v1516 = vrot.slane %v1446, %v1515
    %v1517 = vlaneseq
    %v1518 = vshrl.u32 %v1517, 7
    %v1519 = vsub.s32 0, %v1518
    %v1520 = vrot.slane %v1460, %v1519
    %v1521 = vlaneseq
    %v1522 = vshrl.u32 %v1521, 7
    %v1523 = vsub.s32 0, %v1522
    %v1524 = vrot.slane %v1462, %v1523
    %v1525 = vlaneseq
    %v1526 = vshrl.u32 %v1525, 7
    %v1527 = vsub.s32 0, %v1526
    %v1528 = vrot.slane %v1464, %v1527
    %v1545 = vmul.f32 %v869, %v1468
    %v1546 = vmul.f32 %v901, %v1472
    %v1547 = vmul.f32 %v933, %v1476
    %v1548 = vmul.f32 %v965, %v1480
    %v1549 = vmul.f32 %v997, %v1484
    %v1550 = vmul.f32 %v1029, %v1488
    %v1551 = vmul.f32 %v1061, %v1492
    %v1552 = vmul.f32 %v1093, %v1496
    %v1553 = vmul.f32 %v1125, %v1500
    %v1554 = vmul.f32 %v1157, %v1504
    %v1555 = vmul.f32 %v1189, %v1508
    %v1556 = vmul.f32 %v1221, %v1512
    %v1557 = vmul.f32 %v1253, %v1516
    %v1558 = vmul.f32 %v1285, %v1520
    %v1559 = vmul.f32 %v1317, %v1524
    %v1560 = vmul.f32 %v1349, %v1528
    %vm1561 = vcmask 126976
    %v1562 = vsel %vm1561, %v1545, -inf
    %1563 = vmax.xlane.f32.xlu0 %v1562
    %v1564 = vpop.xlane.xlu0 %1563
    %v1565 = vsel %vm1561, %v1546, -inf
    %1566 = vmax.xlane.f32.xlu0 %v1565
    %v1567 = vpop.xlane.xlu0 %1566
    %v1568 = vsel %vm1561, %v1547, -inf
    %1569 = vmax.xlane.f32.xlu0 %v1568
    %v1570 = vpop.xlane.xlu0 %1569
    %v1571 = vsel %vm1561, %v1548, -inf
    %1572 = vmax.xlane.f32.xlu0 %v1571
    %v1573 = vpop.xlane.xlu0 %1572
    %v1574 = vsel %vm1561, %v1549, -inf
    %1575 = vmax.xlane.f32.xlu0 %v1574
    %v1576 = vpop.xlane.xlu0 %1575
    %v1577 = vsel %vm1561, %v1550, -inf
    %1578 = vmax.xlane.f32.xlu0 %v1577
    %v1579 = vpop.xlane.xlu0 %1578
    %v1580 = vsel %vm1561, %v1551, -inf
    %1581 = vmax.xlane.f32.xlu0 %v1580
    %v1582 = vpop.xlane.xlu0 %1581
    %v1583 = vsel %vm1561, %v1552, -inf
    %1584 = vmax.xlane.f32.xlu0 %v1583
    %v1585 = vpop.xlane.xlu0 %1584
    %v1586 = vsel %vm1561, %v1553, -inf
    %1587 = vmax.xlane.f32.xlu0 %v1586
    %v1588 = vpop.xlane.xlu0 %1587
    %v1589 = vsel %vm1561, %v1554, -inf
    %1590 = vmax.xlane.f32.xlu0 %v1589
    %v1591 = vpop.xlane.xlu0 %1590
    %v1592 = vsel %vm1561, %v1555, -inf
    %1593 = vmax.xlane.f32.xlu0 %v1592
    %v1594 = vpop.xlane.xlu0 %1593
    %v1595 = vsel %vm1561, %v1556, -inf
    %1596 = vmax.xlane.f32.xlu0 %v1595
    %v1597 = vpop.xlane.xlu0 %1596
    %v1598 = vsel %vm1561, %v1557, -inf
    %1599 = vmax.xlane.f32.xlu0 %v1598
    %v1600 = vpop.xlane.xlu0 %1599
    %v1601 = vsel %vm1561, %v1558, -inf
    %1602 = vmax.xlane.f32.xlu0 %v1601
    %v1603 = vpop.xlane.xlu0 %1602
    %v1604 = vsel %vm1561, %v1559, -inf
    %1605 = vmax.xlane.f32.xlu0 %v1604
    %v1606 = vpop.xlane.xlu0 %1605
    %v1607 = vsel %vm1561, %v1560, -inf
    %1608 = vmax.xlane.f32.xlu0 %v1607
    %v1609 = vpop.xlane.xlu0 %1608
    %v1610 = vsub.f32 %v1545, %v1564
    %v1611 = vsub.f32 %v1546, %v1567
    %v1612 = vsub.f32 %v1547, %v1570
    %v1613 = vsub.f32 %v1548, %v1573
    %v1614 = vsub.f32 %v1549, %v1576
    %v1615 = vsub.f32 %v1550, %v1579
    %v1616 = vsub.f32 %v1551, %v1582
    %v1617 = vsub.f32 %v1552, %v1585
    %v1618 = vsub.f32 %v1553, %v1588
    %v1619 = vsub.f32 %v1554, %v1591
    %v1620 = vsub.f32 %v1555, %v1594
    %v1621 = vsub.f32 %v1556, %v1597
    %v1622 = vsub.f32 %v1557, %v1600
    %v1623 = vsub.f32 %v1558, %v1603
    %v1624 = vsub.f32 %v1559, %v1606
    %v1625 = vsub.f32 %v1560, %v1609
    %v1626 = vmul.f32 %v1610, 1.442695
    %v1627 = vpow.pop %v1626
    %v1628 = vmul.f32 %v1611, 1.442695
    %v1629 = vpow.pop %v1628
    %v1630 = vmul.f32 %v1612, 1.442695
    %v1631 = vpow.pop %v1630
    %v1632 = vmul.f32 %v1613, 1.442695
    %v1633 = vpow.pop %v1632
    %v1634 = vmul.f32 %v1614, 1.442695
    %v1635 = vpow.pop %v1634
    %v1636 = vmul.f32 %v1615, 1.442695
    %v1637 = vpow.pop %v1636
    %v1638 = vmul.f32 %v1616, 1.442695
    %v1639 = vpow.pop %v1638
    %v1640 = vmul.f32 %v1617, 1.442695
    %v1641 = vpow.pop %v1640
    %v1642 = vmul.f32 %v1618, 1.442695
    %v1643 = vpow.pop %v1642
    %v1644 = vmul.f32 %v1619, 1.442695
    %v1645 = vpow.pop %v1644
    %v1646 = vmul.f32 %v1620, 1.442695
    %v1647 = vpow.pop %v1646
    %v1648 = vmul.f32 %v1621, 1.442695
    %v1649 = vpow.pop %v1648
    %v1650 = vmul.f32 %v1622, 1.442695
    %v1651 = vpow.pop %v1650
    %v1652 = vmul.f32 %v1623, 1.442695
    %v1653 = vpow.pop %v1652
    %v1654 = vmul.f32 %v1624, 1.442695
    %v1655 = vpow.pop %v1654
    %v1656 = vmul.f32 %v1625, 1.442695
    %v1657 = vpow.pop %v1656
    %v1658 = vmul.f32 %v1627, %v1468
    %v1659 = vmul.f32 %v1629, %v1472
    %v1660 = vmul.f32 %v1631, %v1476
    %v1661 = vmul.f32 %v1633, %v1480
    %v1662 = vmul.f32 %v1635, %v1484
    %v1663 = vmul.f32 %v1637, %v1488
    %v1664 = vmul.f32 %v1639, %v1492
    %v1665 = vmul.f32 %v1641, %v1496
    %v1666 = vmul.f32 %v1643, %v1500
    %v1667 = vmul.f32 %v1645, %v1504
    %v1668 = vmul.f32 %v1647, %v1508
    %v1669 = vmul.f32 %v1649, %v1512
    %v1670 = vmul.f32 %v1651, %v1516
    %v1671 = vmul.f32 %v1653, %v1520
    %v1672 = vmul.f32 %v1655, %v1524
    %v1673 = vmul.f32 %v1657, %v1528
    %v1674 = vsel %vm1561, %v1658, 0.0
    %1675 = vadd.xlane.f32.xlu0 %v1674
    %v1676 = vpop.xlane.xlu0 %1675
    %v1677 = vsel %vm1561, %v1659, 0.0
    %1678 = vadd.xlane.f32.xlu0 %v1677
    %v1679 = vpop.xlane.xlu0 %1678
    %v1680 = vsel %vm1561, %v1660, 0.0
    %1681 = vadd.xlane.f32.xlu0 %v1680
    %v1682 = vpop.xlane.xlu0 %1681
    %v1683 = vsel %vm1561, %v1661, 0.0
    %1684 = vadd.xlane.f32.xlu0 %v1683
    %v1685 = vpop.xlane.xlu0 %1684
    %v1686 = vsel %vm1561, %v1662, 0.0
    %1687 = vadd.xlane.f32.xlu0 %v1686
    %v1688 = vpop.xlane.xlu0 %1687
    %v1689 = vsel %vm1561, %v1663, 0.0
    %1690 = vadd.xlane.f32.xlu0 %v1689
    %v1691 = vpop.xlane.xlu0 %1690
    %v1692 = vsel %vm1561, %v1664, 0.0
    %1693 = vadd.xlane.f32.xlu0 %v1692
    %v1694 = vpop.xlane.xlu0 %1693
    %v1695 = vsel %vm1561, %v1665, 0.0
    %1696 = vadd.xlane.f32.xlu0 %v1695
    %v1697 = vpop.xlane.xlu0 %1696
    %v1698 = vsel %vm1561, %v1666, 0.0
    %1699 = vadd.xlane.f32.xlu0 %v1698
    %v1700 = vpop.xlane.xlu0 %1699
    %v1701 = vsel %vm1561, %v1667, 0.0
    %1702 = vadd.xlane.f32.xlu0 %v1701
    %v1703 = vpop.xlane.xlu0 %1702
    %v1704 = vsel %vm1561, %v1668, 0.0
    %1705 = vadd.xlane.f32.xlu0 %v1704
    %v1706 = vpop.xlane.xlu0 %1705
    %v1707 = vsel %vm1561, %v1669, 0.0
    %1708 = vadd.xlane.f32.xlu0 %v1707
    %v1709 = vpop.xlane.xlu0 %1708
    %v1710 = vsel %vm1561, %v1670, 0.0
    %1711 = vadd.xlane.f32.xlu0 %v1710
    %v1712 = vpop.xlane.xlu0 %1711
    %v1713 = vsel %vm1561, %v1671, 0.0
    %1714 = vadd.xlane.f32.xlu0 %v1713
    %v1715 = vpop.xlane.xlu0 %1714
    %v1716 = vsel %vm1561, %v1672, 0.0
    %1717 = vadd.xlane.f32.xlu0 %v1716
    %v1718 = vpop.xlane.xlu0 %1717
    %v1719 = vsel %vm1561, %v1673, 0.0
    %1720 = vadd.xlane.f32.xlu0 %v1719
    %v1721 = vpop.xlane.xlu0 %1720
    %v1722 = vsel %vm1561, %v1627, 0.0
    %1723 = vadd.xlane.f32.xlu0 %v1722
    %v1724 = vpop.xlane.xlu0 %1723
    %v1725 = vsel %vm1561, %v1629, 0.0
    %1726 = vadd.xlane.f32.xlu0 %v1725
    %v1727 = vpop.xlane.xlu0 %1726
    %v1728 = vsel %vm1561, %v1631, 0.0
    %1729 = vadd.xlane.f32.xlu0 %v1728
    %v1730 = vpop.xlane.xlu0 %1729
    %v1731 = vsel %vm1561, %v1633, 0.0
    %1732 = vadd.xlane.f32.xlu0 %v1731
    %v1733 = vpop.xlane.xlu0 %1732
    %v1734 = vsel %vm1561, %v1635, 0.0
    %1735 = vadd.xlane.f32.xlu0 %v1734
    %v1736 = vpop.xlane.xlu0 %1735
    %v1737 = vsel %vm1561, %v1637, 0.0
    %1738 = vadd.xlane.f32.xlu0 %v1737
    %v1739 = vpop.xlane.xlu0 %1738
    %v1740 = vsel %vm1561, %v1639, 0.0
    %1741 = vadd.xlane.f32.xlu0 %v1740
    %v1742 = vpop.xlane.xlu0 %1741
    %v1743 = vsel %vm1561, %v1641, 0.0
    %1744 = vadd.xlane.f32.xlu0 %v1743
    %v1745 = vpop.xlane.xlu0 %1744
    %v1746 = vsel %vm1561, %v1643, 0.0
    %1747 = vadd.xlane.f32.xlu0 %v1746
    %v1748 = vpop.xlane.xlu0 %1747
    %v1749 = vsel %vm1561, %v1645, 0.0
    %1750 = vadd.xlane.f32.xlu0 %v1749
    %v1751 = vpop.xlane.xlu0 %1750
    %v1752 = vsel %vm1561, %v1647, 0.0
    %1753 = vadd.xlane.f32.xlu0 %v1752
    %v1754 = vpop.xlane.xlu0 %1753
    %v1755 = vsel %vm1561, %v1649, 0.0
    %1756 = vadd.xlane.f32.xlu0 %v1755
    %v1757 = vpop.xlane.xlu0 %1756
    %v1758 = vsel %vm1561, %v1651, 0.0
    %1759 = vadd.xlane.f32.xlu0 %v1758
    %v1760 = vpop.xlane.xlu0 %1759
    %v1761 = vsel %vm1561, %v1653, 0.0
    %1762 = vadd.xlane.f32.xlu0 %v1761
    %v1763 = vpop.xlane.xlu0 %1762
    %v1764 = vsel %vm1561, %v1655, 0.0
    %1765 = vadd.xlane.f32.xlu0 %v1764
    %v1766 = vpop.xlane.xlu0 %1765
    %v1767 = vsel %vm1561, %v1657, 0.0
    %1768 = vadd.xlane.f32.xlu0 %v1767
    %v1769 = vpop.xlane.xlu0 %1768
    %v1770 = vmul.f32 %v1724, 1e-13
    %v1771 = vmul.f32 %v1727, 1e-13
    %v1772 = vmul.f32 %v1730, 1e-13
    %v1773 = vmul.f32 %v1733, 1e-13
    %v1774 = vmul.f32 %v1736, 1e-13
    %v1775 = vmul.f32 %v1739, 1e-13
    %v1776 = vmul.f32 %v1742, 1e-13
    %v1777 = vmul.f32 %v1745, 1e-13
    %v1778 = vmul.f32 %v1748, 1e-13
    %v1779 = vmul.f32 %v1751, 1e-13
    %v1780 = vmul.f32 %v1754, 1e-13
    %v1781 = vmul.f32 %v1757, 1e-13
    %v1782 = vmul.f32 %v1760, 1e-13
    %v1783 = vmul.f32 %v1763, 1e-13
    %v1784 = vmul.f32 %v1766, 1e-13
    %v1785 = vmul.f32 %v1769, 1e-13
    %v1786 = vadd.f32 %v1676, %v1770
    %v1787 = vadd.f32 %v1679, %v1771
    %v1788 = vadd.f32 %v1682, %v1772
    %v1789 = vadd.f32 %v1685, %v1773
    %v1790 = vadd.f32 %v1688, %v1774
    %v1791 = vadd.f32 %v1691, %v1775
    %v1792 = vadd.f32 %v1694, %v1776
    %v1793 = vadd.f32 %v1697, %v1777
    %v1794 = vadd.f32 %v1700, %v1778
    %v1795 = vadd.f32 %v1703, %v1779
    %v1796 = vadd.f32 %v1706, %v1780
    %v1797 = vadd.f32 %v1709, %v1781
    %v1798 = vadd.f32 %v1712, %v1782
    %v1799 = vadd.f32 %v1715, %v1783
    %v1800 = vadd.f32 %v1718, %v1784
    %v1801 = vadd.f32 %v1721, %v1785
    %v1802 = vrcp.pop %v1786
    %v1803 = vrcp.pop %v1787
    %v1804 = vrcp.pop %v1788
    %v1805 = vrcp.pop %v1789
    %v1806 = vrcp.pop %v1790
    %v1807 = vrcp.pop %v1791
    %v1808 = vrcp.pop %v1792
    %v1809 = vrcp.pop %v1793
    %v1810 = vrcp.pop %v1794
    %v1811 = vrcp.pop %v1795
    %v1812 = vrcp.pop %v1796
    %v1813 = vrcp.pop %v1797
    %v1814 = vrcp.pop %v1798
    %v1815 = vrcp.pop %v1799
    %v1816 = vrcp.pop %v1800
    %v1817 = vrcp.pop %v1801
    %v1818 = vmul.f32 %v1658, %v1802
    %v1819 = vmul.f32 %v1659, %v1803
    %v1820 = vmul.f32 %v1660, %v1804
    %v1821 = vmul.f32 %v1661, %v1805
    %v1822 = vmul.f32 %v1662, %v1806
    %v1823 = vmul.f32 %v1663, %v1807
    %v1824 = vmul.f32 %v1664, %v1808
    %v1825 = vmul.f32 %v1665, %v1809
    %v1826 = vmul.f32 %v1666, %v1810
    %v1827 = vmul.f32 %v1667, %v1811
    %v1828 = vmul.f32 %v1668, %v1812
    %v1829 = vmul.f32 %v1669, %v1813
    %v1830 = vmul.f32 %v1670, %v1814
    %v1831 = vmul.f32 %v1671, %v1815
    %v1832 = vmul.f32 %v1672, %v1816
    %v1833 = vmul.f32 %v1673, %v1817
    %vm1834 = vcmask 130048
    %v1836 = vsel %vm1834, %v1818, 0
    %1838 = vmatprep.subr.mxu0 0.0
    %1839 = vmatpush1.msra.mxu0 %v34
    %1840 = vmatprep.subr.mxu0 0.0
    %1841 = vmatpush1.msra.mxu0 %v35
    %1842 = vmatprep.subr.mxu0 0.0
    %1843 = vmatpush1.msra.mxu0 0.0
    %1844 = vmatprep.subr.mxu0 0.0
    %1845 = vmatpush1.msra.mxu0 0.0
    %1846 = vmatprep.subr.mxu0 0.0
    %1847 = vmatpush1.msra.mxu0 0.0
    %1848 = vmatprep.subr.mxu0 0.0
    %1849 = vmatpush1.msra.mxu0 0.0
    %1850 = vmatprep.subr.mxu0 0.0
    %1851 = vmatpush1.msra.mxu0 0.0
    %1852 = vmatprep.subr.mxu0 0.0
    %1853 = vmatpush1.msra.mxu0 0.0
    %1854 = vmatprep.subr.mxu0 0.0
    %1855 = vmatpush1.msra.mxu0 0.0
    %1856 = vmatprep.subr.mxu0 0.0
    %1857 = vmatpush1.msra.mxu0 0.0
    %1858 = vmatprep.subr.mxu0 0.0
    %1859 = vmatpush1.msra.mxu0 0.0
    %1860 = vmatprep.subr.mxu0 0.0
    %1861 = vmatpush1.msra.mxu0 0.0
    %1862 = vmatprep.subr.mxu0 0.0
    %1863 = vmatpush1.msra.mxu0 0.0
    %1864 = vmatprep.subr.mxu0 0.0
    %1865 = vmatpush1.msra.mxu0 0.0
    %1866 = vmatprep.subr.mxu0 0.0
    %1867 = vmatpush1.msra.mxu0 0.0
    %1868 = vmatprep.subr.mxu0 0.0
    %1869 = vmatpush1.msra.mxu0 0.0
    %1870 = vmatprep.subr.mxu0 0.0
    %1871 = vmatpush1.msra.mxu0 0.0
    %1872 = vmatprep.subr.mxu0 0.0
    %1873 = vmatpush1.msra.mxu0 0.0
    %1874 = vmatprep.subr.mxu0 0.0
    %1875 = vmatpush1.msra.mxu0 0.0
    %1876 = vmatprep.subr.mxu0 0.0
    %1877 = vmatpush1.msra.mxu0 0.0
    %1878 = vmatprep.subr.mxu0 0.0
    %1879 = vmatpush1.msra.mxu0 0.0
    %1880 = vmatprep.subr.mxu0 0.0
    %1881 = vmatpush1.msra.mxu0 0.0
    %1882 = vmatprep.subr.mxu0 0.0
    %1883 = vmatpush1.msra.mxu0 0.0
    %1884 = vmatprep.subr.mxu0 0.0
    %1885 = vmatpush1.msra.mxu0 0.0
    %1886 = vmatprep.subr.mxu0 0.0
    %1887 = vmatpush1.msra.mxu0 0.0
    %1888 = vmatprep.subr.mxu0 0.0
    %1889 = vmatpush1.msra.mxu0 0.0
    %1890 = vmatprep.subr.mxu0 0.0
    %1891 = vmatpush1.msra.mxu0 0.0
    %1892 = vmatprep.subr.mxu0 0.0
    %1893 = vmatpush1.msra.mxu0 0.0
    %1894 = vmatprep.subr.mxu0 0.0
    %1895 = vmatpush1.msra.mxu0 0.0
    %1896 = vmatprep.subr.mxu0 0.0
    %1897 = vmatpush1.msra.mxu0 0.0
    %1898 = vmatprep.subr.mxu0 0.0
    %1899 = vmatpush1.msra.mxu0 0.0
    %1900 = vmatprep.subr.mxu0 0.0
    %1901 = vmatpush1.msra.mxu0 0.0
    %1902 = vmatprep.mubr.f32.mxu0 0.0
    %1903 = vmatmul.mubr.f32.gmra.mrb[0].mxu0 %v1836
    %v1904 = vpop.f32.mrb[0].mxu0
    %v1905 = vadd.f32 0.0, %v1904
    %v1906 = vpop.f32.mrb[0].mxu0
    %1907 = vdwg.mxu0
    %v1909 = vsel %vm1834, %v1819, 0
    %1911 = vmatprep.subr.mxu0 0.0
    %1912 = vmatpush1.msra.mxu0 %v36
    %1913 = vmatprep.subr.mxu0 0.0
    %1914 = vmatpush1.msra.mxu0 %v37
    %1915 = vmatprep.subr.mxu0 0.0
    %1916 = vmatpush1.msra.mxu0 0.0
    %1917 = vmatprep.subr.mxu0 0.0
    %1918 = vmatpush1.msra.mxu0 0.0
    %1919 = vmatprep.subr.mxu0 0.0
    %1920 = vmatpush1.msra.mxu0 0.0
    %1921 = vmatprep.subr.mxu0 0.0
    %1922 = vmatpush1.msra.mxu0 0.0
    %1923 = vmatprep.subr.mxu0 0.0
    %1924 = vmatpush1.msra.mxu0 0.0
    %1925 = vmatprep.subr.mxu0 0.0
    %1926 = vmatpush1.msra.mxu0 0.0
    %1927 = vmatprep.subr.mxu0 0.0
    %1928 = vmatpush1.msra.mxu0 0.0
    %1929 = vmatprep.subr.mxu0 0.0
    %1930 = vmatpush1.msra.mxu0 0.0
    %1931 = vmatprep.subr.mxu0 0.0
    %1932 = vmatpush1.msra.mxu0 0.0
    %1933 = vmatprep.subr.mxu0 0.0
    %1934 = vmatpush1.msra.mxu0 0.0
    %1935 = vmatprep.subr.mxu0 0.0
    %1936 = vmatpush1.msra.mxu0 0.0
    %1937 = vmatprep.subr.mxu0 0.0
    %1938 = vmatpush1.msra.mxu0 0.0
    %1939 = vmatprep.subr.mxu0 0.0
    %1940 = vmatpush1.msra.mxu0 0.0
    %1941 = vmatprep.subr.mxu0 0.0
    %1942 = vmatpush1.msra.mxu0 0.0
    %1943 = vmatprep.subr.mxu0 0.0
    %1944 = vmatpush1.msra.mxu0 0.0
    %1945 = vmatprep.subr.mxu0 0.0
    %1946 = vmatpush1.msra.mxu0 0.0
    %1947 = vmatprep.subr.mxu0 0.0
    %1948 = vmatpush1.msra.mxu0 0.0
    %1949 = vmatprep.subr.mxu0 0.0
    %1950 = vmatpush1.msra.mxu0 0.0
    %1951 = vmatprep.subr.mxu0 0.0
    %1952 = vmatpush1.msra.mxu0 0.0
    %1953 = vmatprep.subr.mxu0 0.0
    %1954 = vmatpush1.msra.mxu0 0.0
    %1955 = vmatprep.subr.mxu0 0.0
    %1956 = vmatpush1.msra.mxu0 0.0
    %1957 = vmatprep.subr.mxu0 0.0
    %1958 = vmatpush1.msra.mxu0 0.0
    %1959 = vmatprep.subr.mxu0 0.0
    %1960 = vmatpush1.msra.mxu0 0.0
    %1961 = vmatprep.subr.mxu0 0.0
    %1962 = vmatpush1.msra.mxu0 0.0
    %1963 = vmatprep.subr.mxu0 0.0
    %1964 = vmatpush1.msra.mxu0 0.0
    %1965 = vmatprep.subr.mxu0 0.0
    %1966 = vmatpush1.msra.mxu0 0.0
    %1967 = vmatprep.subr.mxu0 0.0
    %1968 = vmatpush1.msra.mxu0 0.0
    %1969 = vmatprep.subr.mxu0 0.0
    %1970 = vmatpush1.msra.mxu0 0.0
    %1971 = vmatprep.subr.mxu0 0.0
    %1972 = vmatpush1.msra.mxu0 0.0
    %1973 = vmatprep.subr.mxu0 0.0
    %1974 = vmatpush1.msra.mxu0 0.0
    %1975 = vmatprep.mubr.f32.mxu0 0.0
    %1976 = vmatmul.mubr.f32.gmra.mrb[0].mxu0 %v1909
    %v1977 = vpop.f32.mrb[0].mxu0
    %v1978 = vadd.f32 0.0, %v1977
    %v1979 = vpop.f32.mrb[0].mxu0
    %1980 = vdwg.mxu0
    %v1982 = vsel %vm1834, %v1820, 0
    %1984 = vmatprep.subr.mxu0 0.0
    %1985 = vmatpush1.msra.mxu0 %v38
    %1986 = vmatprep.subr.mxu0 0.0
    %1987 = vmatpush1.msra.mxu0 %v39
    %1988 = vmatprep.subr.mxu0 0.0
    %1989 = vmatpush1.msra.mxu0 0.0
    %1990 = vmatprep.subr.mxu0 0.0
    %1991 = vmatpush1.msra.mxu0 0.0
    %1992 = vmatprep.subr.mxu0 0.0
    %1993 = vmatpush1.msra.mxu0 0.0
    %1994 = vmatprep.subr.mxu0 0.0
    %1995 = vmatpush1.msra.mxu0 0.0
    %1996 = vmatprep.subr.mxu0 0.0
    %1997 = vmatpush1.msra.mxu0 0.0
    %1998 = vmatprep.subr.mxu0 0.0
    %1999 = vmatpush1.msra.mxu0 0.0
    %2000 = vmatprep.subr.mxu0 0.0
    %2001 = vmatpush1.msra.mxu0 0.0
    %2002 = vmatprep.subr.mxu0 0.0
    %2003 = vmatpush1.msra.mxu0 0.0
    %2004 = vmatprep.subr.mxu0 0.0
    %2005 = vmatpush1.msra.mxu0 0.0
    %2006 = vmatprep.subr.mxu0 0.0
    %2007 = vmatpush1.msra.mxu0 0.0
    %2008 = vmatprep.subr.mxu0 0.0
    %2009 = vmatpush1.msra.mxu0 0.0
    %2010 = vmatprep.subr.mxu0 0.0
    %2011 = vmatpush1.msra.mxu0 0.0
    %2012 = vmatprep.subr.mxu0 0.0
    %2013 = vmatpush1.msra.mxu0 0.0
    %2014 = vmatprep.subr.mxu0 0.0
    %2015 = vmatpush1.msra.mxu0 0.0
    %2016 = vmatprep.subr.mxu0 0.0
    %2017 = vmatpush1.msra.mxu0 0.0
    %2018 = vmatprep.subr.mxu0 0.0
    %2019 = vmatpush1.msra.mxu0 0.0
    %2020 = vmatprep.subr.mxu0 0.0
    %2021 = vmatpush1.msra.mxu0 0.0
    %2022 = vmatprep.subr.mxu0 0.0
    %2023 = vmatpush1.msra.mxu0 0.0
    %2024 = vmatprep.subr.mxu0 0.0
    %2025 = vmatpush1.msra.mxu0 0.0
    %2026 = vmatprep.subr.mxu0 0.0
    %2027 = vmatpush1.msra.mxu0 0.0
    %2028 = vmatprep.subr.mxu0 0.0
    %2029 = vmatpush1.msra.mxu0 0.0
    %2030 = vmatprep.subr.mxu0 0.0
    %2031 = vmatpush1.msra.mxu0 0.0
    %2032 = vmatprep.subr.mxu0 0.0
    %2033 = vmatpush1.msra.mxu0 0.0
    %2034 = vmatprep.subr.mxu0 0.0
    %2035 = vmatpush1.msra.mxu0 0.0
    %2036 = vmatprep.subr.mxu0 0.0
    %2037 = vmatpush1.msra.mxu0 0.0
    %2038 = vmatprep.subr.mxu0 0.0
    %2039 = vmatpush1.msra.mxu0 0.0
    %2040 = vmatprep.subr.mxu0 0.0
    %2041 = vmatpush1.msra.mxu0 0.0
    %2042 = vmatprep.subr.mxu0 0.0
    %2043 = vmatpush1.msra.mxu0 0.0
    %2044 = vmatprep.subr.mxu0 0.0
    %2045 = vmatpush1.msra.mxu0 0.0
    %2046 = vmatprep.subr.mxu0 0.0
    %2047 = vmatpush1.msra.mxu0 0.0
    %2048 = vmatprep.mubr.f32.mxu0 0.0
    %2049 = vmatmul.mubr.f32.gmra.mrb[0].mxu0 %v1982
    %v2050 = vpop.f32.mrb[0].mxu0
    %v2051 = vadd.f32 0.0, %v2050
    %v2052 = vpop.f32.mrb[0].mxu0
    %2053 = vdwg.mxu0
    %v2055 = vsel %vm1834, %v1821, 0
    %2057 = vmatprep.subr.mxu0 0.0
    %2058 = vmatpush1.msra.mxu0 %v40
    %2059 = vmatprep.subr.mxu0 0.0
    %2060 = vmatpush1.msra.mxu0 %v41
    %2061 = vmatprep.subr.mxu0 0.0
    %2062 = vmatpush1.msra.mxu0 0.0
    %2063 = vmatprep.subr.mxu0 0.0
    %2064 = vmatpush1.msra.mxu0 0.0
    %2065 = vmatprep.subr.mxu0 0.0
    %2066 = vmatpush1.msra.mxu0 0.0
    %2067 = vmatprep.subr.mxu0 0.0
    %2068 = vmatpush1.msra.mxu0 0.0
    %2069 = vmatprep.subr.mxu0 0.0
    %2070 = vmatpush1.msra.mxu0 0.0
    %2071 = vmatprep.subr.mxu0 0.0
    %2072 = vmatpush1.msra.mxu0 0.0
    %2073 = vmatprep.subr.mxu0 0.0
    %2074 = vmatpush1.msra.mxu0 0.0
    %2075 = vmatprep.subr.mxu0 0.0
    %2076 = vmatpush1.msra.mxu0 0.0
    %2077 = vmatprep.subr.mxu0 0.0
    %2078 = vmatpush1.msra.mxu0 0.0
    %2079 = vmatprep.subr.mxu0 0.0
    %2080 = vmatpush1.msra.mxu0 0.0
    %2081 = vmatprep.subr.mxu0 0.0
    %2082 = vmatpush1.msra.mxu0 0.0
    %2083 = vmatprep.subr.mxu0 0.0
    %2084 = vmatpush1.msra.mxu0 0.0
    %2085 = vmatprep.subr.mxu0 0.0
    %2086 = vmatpush1.msra.mxu0 0.0
    %2087 = vmatprep.subr.mxu0 0.0
    %2088 = vmatpush1.msra.mxu0 0.0
    %2089 = vmatprep.subr.mxu0 0.0
    %2090 = vmatpush1.msra.mxu0 0.0
    %2091 = vmatprep.subr.mxu0 0.0
    %2092 = vmatpush1.msra.mxu0 0.0
    %2093 = vmatprep.subr.mxu0 0.0
    %2094 = vmatpush1.msra.mxu0 0.0
    %2095 = vmatprep.subr.mxu0 0.0
    %2096 = vmatpush1.msra.mxu0 0.0
    %2097 = vmatprep.subr.mxu0 0.0
    %2098 = vmatpush1.msra.mxu0 0.0
    %2099 = vmatprep.subr.mxu0 0.0
    %2100 = vmatpush1.msra.mxu0 0.0
    %2101 = vmatprep.subr.mxu0 0.0
    %2102 = vmatpush1.msra.mxu0 0.0
    %2103 = vmatprep.subr.mxu0 0.0
    %2104 = vmatpush1.msra.mxu0 0.0
    %2105 = vmatprep.subr.mxu0 0.0
    %2106 = vmatpush1.msra.mxu0 0.0
    %2107 = vmatprep.subr.mxu0 0.0
    %2108 = vmatpush1.msra.mxu0 0.0
    %2109 = vmatprep.subr.mxu0 0.0
    %2110 = vmatpush1.msra.mxu0 0.0
    %2111 = vmatprep.subr.mxu0 0.0
    %2112 = vmatpush1.msra.mxu0 0.0
    %2113 = vmatprep.subr.mxu0 0.0
    %2114 = vmatpush1.msra.mxu0 0.0
    %2115 = vmatprep.subr.mxu0 0.0
    %2116 = vmatpush1.msra.mxu0 0.0
    %2117 = vmatprep.subr.mxu0 0.0
    %2118 = vmatpush1.msra.mxu0 0.0
    %2119 = vmatprep.subr.mxu0 0.0
    %2120 = vmatpush1.msra.mxu0 0.0
    %2121 = vmatprep.mubr.f32.mxu0 0.0
    %2122 = vmatmul.mubr.f32.gmra.mrb[0].mxu0 %v2055
    %v2123 = vpop.f32.mrb[0].mxu0
    %v2124 = vadd.f32 0.0, %v2123
    %v2125 = vpop.f32.mrb[0].mxu0
    %2126 = vdwg.mxu0
    %v2128 = vsel %vm1834, %v1822, 0
    %2130 = vmatprep.subr.mxu0 0.0
    %2131 = vmatpush1.msra.mxu0 %v42
    %2132 = vmatprep.subr.mxu0 0.0
    %2133 = vmatpush1.msra.mxu0 %v43
    %2134 = vmatprep.subr.mxu0 0.0
    %2135 = vmatpush1.msra.mxu0 0.0
    %2136 = vmatprep.subr.mxu0 0.0
    %2137 = vmatpush1.msra.mxu0 0.0
    %2138 = vmatprep.subr.mxu0 0.0
    %2139 = vmatpush1.msra.mxu0 0.0
    %2140 = vmatprep.subr.mxu0 0.0
    %2141 = vmatpush1.msra.mxu0 0.0
    %2142 = vmatprep.subr.mxu0 0.0
    %2143 = vmatpush1.msra.mxu0 0.0
    %2144 = vmatprep.subr.mxu0 0.0
    %2145 = vmatpush1.msra.mxu0 0.0
    %2146 = vmatprep.subr.mxu0 0.0
    %2147 = vmatpush1.msra.mxu0 0.0
    %2148 = vmatprep.subr.mxu0 0.0
    %2149 = vmatpush1.msra.mxu0 0.0
    %2150 = vmatprep.subr.mxu0 0.0
    %2151 = vmatpush1.msra.mxu0 0.0
    %2152 = vmatprep.subr.mxu0 0.0
    %2153 = vmatpush1.msra.mxu0 0.0
    %2154 = vmatprep.subr.mxu0 0.0
    %2155 = vmatpush1.msra.mxu0 0.0
    %2156 = vmatprep.subr.mxu0 0.0
    %2157 = vmatpush1.msra.mxu0 0.0
    %2158 = vmatprep.subr.mxu0 0.0
    %2159 = vmatpush1.msra.mxu0 0.0
    %2160 = vmatprep.subr.mxu0 0.0
    %2161 = vmatpush1.msra.mxu0 0.0
    %2162 = vmatprep.subr.mxu0 0.0
    %2163 = vmatpush1.msra.mxu0 0.0
    %2164 = vmatprep.subr.mxu0 0.0
    %2165 = vmatpush1.msra.mxu0 0.0
    %2166 = vmatprep.subr.mxu0 0.0
    %2167 = vmatpush1.msra.mxu0 0.0
    %2168 = vmatprep.subr.mxu0 0.0
    %2169 = vmatpush1.msra.mxu0 0.0
    %2170 = vmatprep.subr.mxu0 0.0
    %2171 = vmatpush1.msra.mxu0 0.0
    %2172 = vmatprep.subr.mxu0 0.0
    %2173 = vmatpush1.msra.mxu0 0.0
    %2174 = vmatprep.subr.mxu0 0.0
    %2175 = vmatpush1.msra.mxu0 0.0
    %2176 = vmatprep.subr.mxu0 0.0
    %2177 = vmatpush1.msra.mxu0 0.0
    %2178 = vmatprep.subr.mxu0 0.0
    %2179 = vmatpush1.msra.mxu0 0.0
    %2180 = vmatprep.subr.mxu0 0.0
    %2181 = vmatpush1.msra.mxu0 0.0
    %2182 = vmatprep.subr.mxu0 0.0
    %2183 = vmatpush1.msra.mxu0 0.0
    %2184 = vmatprep.subr.mxu0 0.0
    %2185 = vmatpush1.msra.mxu0 0.0
    %2186 = vmatprep.subr.mxu0 0.0
    %2187 = vmatpush1.msra.mxu0 0.0
    %2188 = vmatprep.subr.mxu0 0.0
    %2189 = vmatpush1.msra.mxu0 0.0
    %2190 = vmatprep.subr.mxu0 0.0
    %2191 = vmatpush1.msra.mxu0 0.0
    %2192 = vmatprep.subr.mxu0 0.0
    %2193 = vmatpush1.msra.mxu0 0.0
    %2194 = vmatprep.mubr.f32.mxu0 0.0
    %2195 = vmatmul.mubr.f32.gmra.mrb[0].mxu0 %v2128
    %v2196 = vpop.f32.mrb[0].mxu0
    %v2197 = vadd.f32 0.0, %v2196
    %v2198 = vpop.f32.mrb[0].mxu0
    %2199 = vdwg.mxu0
    %v2201 = vsel %vm1834, %v1823, 0
    %2203 = vmatprep.subr.mxu0 0.0
    %2204 = vmatpush1.msra.mxu0 %v44
    %2205 = vmatprep.subr.mxu0 0.0
    %2206 = vmatpush1.msra.mxu0 %v45
    %2207 = vmatprep.subr.mxu0 0.0
    %2208 = vmatpush1.msra.mxu0 0.0
    %2209 = vmatprep.subr.mxu0 0.0
    %2210 = vmatpush1.msra.mxu0 0.0
    %2211 = vmatprep.subr.mxu0 0.0
    %2212 = vmatpush1.msra.mxu0 0.0
    %2213 = vmatprep.subr.mxu0 0.0
    %2214 = vmatpush1.msra.mxu0 0.0
    %2215 = vmatprep.subr.mxu0 0.0
    %2216 = vmatpush1.msra.mxu0 0.0
    %2217 = vmatprep.subr.mxu0 0.0
    %2218 = vmatpush1.msra.mxu0 0.0
    %2219 = vmatprep.subr.mxu0 0.0
    %2220 = vmatpush1.msra.mxu0 0.0
    %2221 = vmatprep.subr.mxu0 0.0
    %2222 = vmatpush1.msra.mxu0 0.0
    %2223 = vmatprep.subr.mxu0 0.0
    %2224 = vmatpush1.msra.mxu0 0.0
    %2225 = vmatprep.subr.mxu0 0.0
    %2226 = vmatpush1.msra.mxu0 0.0
    %2227 = vmatprep.subr.mxu0 0.0
    %2228 = vmatpush1.msra.mxu0 0.0
    %2229 = vmatprep.subr.mxu0 0.0
    %2230 = vmatpush1.msra.mxu0 0.0
    %2231 = vmatprep.subr.mxu0 0.0
    %2232 = vmatpush1.msra.mxu0 0.0
    %2233 = vmatprep.subr.mxu0 0.0
    %2234 = vmatpush1.msra.mxu0 0.0
    %2235 = vmatprep.subr.mxu0 0.0
    %2236 = vmatpush1.msra.mxu0 0.0
    %2237 = vmatprep.subr.mxu0 0.0
    %2238 = vmatpush1.msra.mxu0 0.0
    %2239 = vmatprep.subr.mxu0 0.0
    %2240 = vmatpush1.msra.mxu0 0.0
    %2241 = vmatprep.subr.mxu0 0.0
    %2242 = vmatpush1.msra.mxu0 0.0
    %2243 = vmatprep.subr.mxu0 0.0
    %2244 = vmatpush1.msra.mxu0 0.0
    %2245 = vmatprep.subr.mxu0 0.0
    %2246 = vmatpush1.msra.mxu0 0.0
    %2247 = vmatprep.subr.mxu0 0.0
    %2248 = vmatpush1.msra.mxu0 0.0
    %2249 = vmatprep.subr.mxu0 0.0
    %2250 = vmatpush1.msra.mxu0 0.0
    %2251 = vmatprep.subr.mxu0 0.0
    %2252 = vmatpush1.msra.mxu0 0.0
    %2253 = vmatprep.subr.mxu0 0.0
    %2254 = vmatpush1.msra.mxu0 0.0
    %2255 = vmatprep.subr.mxu0 0.0
    %2256 = vmatpush1.msra.mxu0 0.0
    %2257 = vmatprep.subr.mxu0 0.0
    %2258 = vmatpush1.msra.mxu0 0.0
    %2259 = vmatprep.subr.mxu0 0.0
    %2260 = vmatpush1.msra.mxu0 0.0
    %2261 = vmatprep.subr.mxu0 0.0
    %2262 = vmatpush1.msra.mxu0 0.0
    %2263 = vmatprep.subr.mxu0 0.0
    %2264 = vmatpush1.msra.mxu0 0.0
    %2265 = vmatprep.subr.mxu0 0.0
    %2266 = vmatpush1.msra.mxu0 0.0
    %2267 = vmatprep.mubr.f32.mxu0 0.0
    %2268 = vmatmul.mubr.f32.gmra.mrb[0].mxu0 %v2201
    %v2269 = vpop.f32.mrb[0].mxu0
    %v2270 = vadd.f32 0.0, %v2269
    %v2271 = vpop.f32.mrb[0].mxu0
    %2272 = vdwg.mxu0
    %v2274 = vsel %vm1834, %v1824, 0
    %2276 = vmatprep.subr.mxu0 0.0
    %2277 = vmatpush1.msra.mxu0 %v46
    %2278 = vmatprep.subr.mxu0 0.0
    %2279 = vmatpush1.msra.mxu0 %v47
    %2280 = vmatprep.subr.mxu0 0.0
    %2281 = vmatpush1.msra.mxu0 0.0
    %2282 = vmatprep.subr.mxu0 0.0
    %2283 = vmatpush1.msra.mxu0 0.0
    %2284 = vmatprep.subr.mxu0 0.0
    %2285 = vmatpush1.msra.mxu0 0.0
    %2286 = vmatprep.subr.mxu0 0.0
    %2287 = vmatpush1.msra.mxu0 0.0
    %2288 = vmatprep.subr.mxu0 0.0
    %2289 = vmatpush1.msra.mxu0 0.0
    %2290 = vmatprep.subr.mxu0 0.0
    %2291 = vmatpush1.msra.mxu0 0.0
    %2292 = vmatprep.subr.mxu0 0.0
    %2293 = vmatpush1.msra.mxu0 0.0
    %2294 = vmatprep.subr.mxu0 0.0
    %2295 = vmatpush1.msra.mxu0 0.0
    %2296 = vmatprep.subr.mxu0 0.0
    %2297 = vmatpush1.msra.mxu0 0.0
    %2298 = vmatprep.subr.mxu0 0.0
    %2299 = vmatpush1.msra.mxu0 0.0
    %2300 = vmatprep.subr.mxu0 0.0
    %2301 = vmatpush1.msra.mxu0 0.0
    %2302 = vmatprep.subr.mxu0 0.0
    %2303 = vmatpush1.msra.mxu0 0.0
    %2304 = vmatprep.subr.mxu0 0.0
    %2305 = vmatpush1.msra.mxu0 0.0
    %2306 = vmatprep.subr.mxu0 0.0
    %2307 = vmatpush1.msra.mxu0 0.0
    %2308 = vmatprep.subr.mxu0 0.0
    %2309 = vmatpush1.msra.mxu0 0.0
    %2310 = vmatprep.subr.mxu0 0.0
    %2311 = vmatpush1.msra.mxu0 0.0
    %2312 = vmatprep.subr.mxu0 0.0
    %2313 = vmatpush1.msra.mxu0 0.0
    %2314 = vmatprep.subr.mxu0 0.0
    %2315 = vmatpush1.msra.mxu0 0.0
    %2316 = vmatprep.subr.mxu0 0.0
    %2317 = vmatpush1.msra.mxu0 0.0
    %2318 = vmatprep.subr.mxu0 0.0
    %2319 = vmatpush1.msra.mxu0 0.0
    %2320 = vmatprep.subr.mxu0 0.0
    %2321 = vmatpush1.msra.mxu0 0.0
    %2322 = vmatprep.subr.mxu0 0.0
    %2323 = vmatpush1.msra.mxu0 0.0
    %2324 = vmatprep.subr.mxu0 0.0
    %2325 = vmatpush1.msra.mxu0 0.0
    %2326 = vmatprep.subr.mxu0 0.0
    %2327 = vmatpush1.msra.mxu0 0.0
    %2328 = vmatprep.subr.mxu0 0.0
    %2329 = vmatpush1.msra.mxu0 0.0
    %2330 = vmatprep.subr.mxu0 0.0
    %2331 = vmatpush1.msra.mxu0 0.0
    %2332 = vmatprep.subr.mxu0 0.0
    %2333 = vmatpush1.msra.mxu0 0.0
    %2334 = vmatprep.subr.mxu0 0.0
    %2335 = vmatpush1.msra.mxu0 0.0
    %2336 = vmatprep.subr.mxu0 0.0
    %2337 = vmatpush1.msra.mxu0 0.0
    %2338 = vmatprep.subr.mxu0 0.0
    %2339 = vmatpush1.msra.mxu0 0.0
    %2340 = vmatprep.mubr.f32.mxu0 0.0
    %2341 = vmatmul.mubr.f32.gmra.mrb[0].mxu0 %v2274
    %v2342 = vpop.f32.mrb[0].mxu0
    %v2343 = vadd.f32 0.0, %v2342
    %v2344 = vpop.f32.mrb[0].mxu0
    %2345 = vdwg.mxu0
    %v2347 = vsel %vm1834, %v1825, 0
    %2349 = vmatprep.subr.mxu0 0.0
    %2350 = vmatpush1.msra.mxu0 %v48
    %2351 = vmatprep.subr.mxu0 0.0
    %2352 = vmatpush1.msra.mxu0 %v49
    %2353 = vmatprep.subr.mxu0 0.0
    %2354 = vmatpush1.msra.mxu0 0.0
    %2355 = vmatprep.subr.mxu0 0.0
    %2356 = vmatpush1.msra.mxu0 0.0
    %2357 = vmatprep.subr.mxu0 0.0
    %2358 = vmatpush1.msra.mxu0 0.0
    %2359 = vmatprep.subr.mxu0 0.0
    %2360 = vmatpush1.msra.mxu0 0.0
    %2361 = vmatprep.subr.mxu0 0.0
    %2362 = vmatpush1.msra.mxu0 0.0
    %2363 = vmatprep.subr.mxu0 0.0
    %2364 = vmatpush1.msra.mxu0 0.0
    %2365 = vmatprep.subr.mxu0 0.0
    %2366 = vmatpush1.msra.mxu0 0.0
    %2367 = vmatprep.subr.mxu0 0.0
    %2368 = vmatpush1.msra.mxu0 0.0
    %2369 = vmatprep.subr.mxu0 0.0
    %2370 = vmatpush1.msra.mxu0 0.0
    %2371 = vmatprep.subr.mxu0 0.0
    %2372 = vmatpush1.msra.mxu0 0.0
    %2373 = vmatprep.subr.mxu0 0.0
    %2374 = vmatpush1.msra.mxu0 0.0
    %2375 = vmatprep.subr.mxu0 0.0
    %2376 = vmatpush1.msra.mxu0 0.0
    %2377 = vmatprep.subr.mxu0 0.0
    %2378 = vmatpush1.msra.mxu0 0.0
    %2379 = vmatprep.subr.mxu0 0.0
    %2380 = vmatpush1.msra.mxu0 0.0
    %2381 = vmatprep.subr.mxu0 0.0
    %2382 = vmatpush1.msra.mxu0 0.0
    %2383 = vmatprep.subr.mxu0 0.0
    %2384 = vmatpush1.msra.mxu0 0.0
    %2385 = vmatprep.subr.mxu0 0.0
    %2386 = vmatpush1.msra.mxu0 0.0
    %2387 = vmatprep.subr.mxu0 0.0
    %2388 = vmatpush1.msra.mxu0 0.0
    %2389 = vmatprep.subr.mxu0 0.0
    %2390 = vmatpush1.msra.mxu0 0.0
    %2391 = vmatprep.subr.mxu0 0.0
    %2392 = vmatpush1.msra.mxu0 0.0
    %2393 = vmatprep.subr.mxu0 0.0
    %2394 = vmatpush1.msra.mxu0 0.0
    %2395 = vmatprep.subr.mxu0 0.0
    %2396 = vmatpush1.msra.mxu0 0.0
    %2397 = vmatprep.subr.mxu0 0.0
    %2398 = vmatpush1.msra.mxu0 0.0
    %2399 = vmatprep.subr.mxu0 0.0
    %2400 = vmatpush1.msra.mxu0 0.0
    %2401 = vmatprep.subr.mxu0 0.0
    %2402 = vmatpush1.msra.mxu0 0.0
    %2403 = vmatprep.subr.mxu0 0.0
    %2404 = vmatpush1.msra.mxu0 0.0
    %2405 = vmatprep.subr.mxu0 0.0
    %2406 = vmatpush1.msra.mxu0 0.0
    %2407 = vmatprep.subr.mxu0 0.0
    %2408 = vmatpush1.msra.mxu0 0.0
    %2409 = vmatprep.subr.mxu0 0.0
    %2410 = vmatpush1.msra.mxu0 0.0
    %2411 = vmatprep.subr.mxu0 0.0
    %2412 = vmatpush1.msra.mxu0 0.0
    %2413 = vmatprep.mubr.f32.mxu0 0.0
    %2414 = vmatmul.mubr.f32.gmra.mrb[0].mxu0 %v2347
    %v2415 = vpop.f32.mrb[0].mxu0
    %v2416 = vadd.f32 0.0, %v2415
    %v2417 = vpop.f32.mrb[0].mxu0
    %2418 = vdwg.mxu0
    %v2420 = vsel %vm1834, %v1826, 0
    %2422 = vmatprep.subr.mxu0 0.0
    %2423 = vmatpush1.msra.mxu0 %v50
    %2424 = vmatprep.subr.mxu0 0.0
    %2425 = vmatpush1.msra.mxu0 %v51
    %2426 = vmatprep.subr.mxu0 0.0
    %2427 = vmatpush1.msra.mxu0 0.0
    %2428 = vmatprep.subr.mxu0 0.0
    %2429 = vmatpush1.msra.mxu0 0.0
    %2430 = vmatprep.subr.mxu0 0.0
    %2431 = vmatpush1.msra.mxu0 0.0
    %2432 = vmatprep.subr.mxu0 0.0
    %2433 = vmatpush1.msra.mxu0 0.0
    %2434 = vmatprep.subr.mxu0 0.0
    %2435 = vmatpush1.msra.mxu0 0.0
    %2436 = vmatprep.subr.mxu0 0.0
    %2437 = vmatpush1.msra.mxu0 0.0
    %2438 = vmatprep.subr.mxu0 0.0
    %2439 = vmatpush1.msra.mxu0 0.0
    %2440 = vmatprep.subr.mxu0 0.0
    %2441 = vmatpush1.msra.mxu0 0.0
    %2442 = vmatprep.subr.mxu0 0.0
    %2443 = vmatpush1.msra.mxu0 0.0
    %2444 = vmatprep.subr.mxu0 0.0
    %2445 = vmatpush1.msra.mxu0 0.0
    %2446 = vmatprep.subr.mxu0 0.0
    %2447 = vmatpush1.msra.mxu0 0.0
    %2448 = vmatprep.subr.mxu0 0.0
    %2449 = vmatpush1.msra.mxu0 0.0
    %2450 = vmatprep.subr.mxu0 0.0
    %2451 = vmatpush1.msra.mxu0 0.0
    %2452 = vmatprep.subr.mxu0 0.0
    %2453 = vmatpush1.msra.mxu0 0.0
    %2454 = vmatprep.subr.mxu0 0.0
    %2455 = vmatpush1.msra.mxu0 0.0
    %2456 = vmatprep.subr.mxu0 0.0
    %2457 = vmatpush1.msra.mxu0 0.0
    %2458 = vmatprep.subr.mxu0 0.0
    %2459 = vmatpush1.msra.mxu0 0.0
    %2460 = vmatprep.subr.mxu0 0.0
    %2461 = vmatpush1.msra.mxu0 0.0
    %2462 = vmatprep.subr.mxu0 0.0
    %2463 = vmatpush1.msra.mxu0 0.0
    %2464 = vmatprep.subr.mxu0 0.0
    %2465 = vmatpush1.msra.mxu0 0.0
    %2466 = vmatprep.subr.mxu0 0.0
    %2467 = vmatpush1.msra.mxu0 0.0
    %2468 = vmatprep.subr.mxu0 0.0
    %2469 = vmatpush1.msra.mxu0 0.0
    %2470 = vmatprep.subr.mxu0 0.0
    %2471 = vmatpush1.msra.mxu0 0.0
    %2472 = vmatprep.subr.mxu0 0.0
    %2473 = vmatpush1.msra.mxu0 0.0
    %2474 = vmatprep.subr.mxu0 0.0
    %2475 = vmatpush1.msra.mxu0 0.0
    %2476 = vmatprep.subr.mxu0 0.0
    %2477 = vmatpush1.msra.mxu0 0.0
    %2478 = vmatprep.subr.mxu0 0.0
    %2479 = vmatpush1.msra.mxu0 0.0
    %2480 = vmatprep.subr.mxu0 0.0
    %2481 = vmatpush1.msra.mxu0 0.0
    %2482 = vmatprep.subr.mxu0 0.0
    %2483 = vmatpush1.msra.mxu0 0.0
    %2484 = vmatprep.subr.mxu0 0.0
    %2485 = vmatpush1.msra.mxu0 0.0
    %2486 = vmatprep.mubr.f32.mxu0 0.0
    %2487 = vmatmul.mubr.f32.gmra.mrb[0].mxu0 %v2420
    %v2488 = vpop.f32.mrb[0].mxu0
    %v2489 = vadd.f32 0.0, %v2488
    %v2490 = vpop.f32.mrb[0].mxu0
    %2491 = vdwg.mxu0
    %v2493 = vsel %vm1834, %v1827, 0
    %2495 = vmatprep.subr.mxu0 0.0
    %2496 = vmatpush1.msra.mxu0 %v52
    %2497 = vmatprep.subr.mxu0 0.0
    %2498 = vmatpush1.msra.mxu0 %v53
    %2499 = vmatprep.subr.mxu0 0.0
    %2500 = vmatpush1.msra.mxu0 0.0
    %2501 = vmatprep.subr.mxu0 0.0
    %2502 = vmatpush1.msra.mxu0 0.0
    %2503 = vmatprep.subr.mxu0 0.0
    %2504 = vmatpush1.msra.mxu0 0.0
    %2505 = vmatprep.subr.mxu0 0.0
    %2506 = vmatpush1.msra.mxu0 0.0
    %2507 = vmatprep.subr.mxu0 0.0
    %2508 = vmatpush1.msra.mxu0 0.0
    %2509 = vmatprep.subr.mxu0 0.0
    %2510 = vmatpush1.msra.mxu0 0.0
    %2511 = vmatprep.subr.mxu0 0.0
    %2512 = vmatpush1.msra.mxu0 0.0
    %2513 = vmatprep.subr.mxu0 0.0
    %2514 = vmatpush1.msra.mxu0 0.0
    %2515 = vmatprep.subr.mxu0 0.0
    %2516 = vmatpush1.msra.mxu0 0.0
    %2517 = vmatprep.subr.mxu0 0.0
    %2518 = vmatpush1.msra.mxu0 0.0
    %2519 = vmatprep.subr.mxu0 0.0
    %2520 = vmatpush1.msra.mxu0 0.0
    %2521 = vmatprep.subr.mxu0 0.0
    %2522 = vmatpush1.msra.mxu0 0.0
    %2523 = vmatprep.subr.mxu0 0.0
    %2524 = vmatpush1.msra.mxu0 0.0
    %2525 = vmatprep.subr.mxu0 0.0
    %2526 = vmatpush1.msra.mxu0 0.0
    %2527 = vmatprep.subr.mxu0 0.0
    %2528 = vmatpush1.msra.mxu0 0.0
    %2529 = vmatprep.subr.mxu0 0.0
    %2530 = vmatpush1.msra.mxu0 0.0
    %2531 = vmatprep.subr.mxu0 0.0
    %2532 = vmatpush1.msra.mxu0 0.0
    %2533 = vmatprep.subr.mxu0 0.0
    %2534 = vmatpush1.msra.mxu0 0.0
    %2535 = vmatprep.subr.mxu0 0.0
    %2536 = vmatpush1.msra.mxu0 0.0
    %2537 = vmatprep.subr.mxu0 0.0
    %2538 = vmatpush1.msra.mxu0 0.0
    %2539 = vmatprep.subr.mxu0 0.0
    %2540 = vmatpush1.msra.mxu0 0.0
    %2541 = vmatprep.subr.mxu0 0.0
    %2542 = vmatpush1.msra.mxu0 0.0
    %2543 = vmatprep.subr.mxu0 0.0
    %2544 = vmatpush1.msra.mxu0 0.0
    %2545 = vmatprep.subr.mxu0 0.0
    %2546 = vmatpush1.msra.mxu0 0.0
    %2547 = vmatprep.subr.mxu0 0.0
    %2548 = vmatpush1.msra.mxu0 0.0
    %2549 = vmatprep.subr.mxu0 0.0
    %2550 = vmatpush1.msra.mxu0 0.0
    %2551 = vmatprep.subr.mxu0 0.0
    %2552 = vmatpush1.msra.mxu0 0.0
    %2553 = vmatprep.subr.mxu0 0.0
    %2554 = vmatpush1.msra.mxu0 0.0
    %2555 = vmatprep.subr.mxu0 0.0
    %2556 = vmatpush1.msra.mxu0 0.0
    %2557 = vmatprep.subr.mxu0 0.0
    %2558 = vmatpush1.msra.mxu0 0.0
    %2559 = vmatprep.mubr.f32.mxu0 0.0
    %2560 = vmatmul.mubr.f32.gmra.mrb[0].mxu0 %v2493
    %v2561 = vpop.f32.mrb[0].mxu0
    %v2562 = vadd.f32 0.0, %v2561
    %v2563 = vpop.f32.mrb[0].mxu0
    %2564 = vdwg.mxu0
    %v2566 = vsel %vm1834, %v1828, 0
    %2568 = vmatprep.subr.mxu0 0.0
    %2569 = vmatpush1.msra.mxu0 %v54
    %2570 = vmatprep.subr.mxu0 0.0
    %2571 = vmatpush1.msra.mxu0 %v55
    %2572 = vmatprep.subr.mxu0 0.0
    %2573 = vmatpush1.msra.mxu0 0.0
    %2574 = vmatprep.subr.mxu0 0.0
    %2575 = vmatpush1.msra.mxu0 0.0
    %2576 = vmatprep.subr.mxu0 0.0
    %2577 = vmatpush1.msra.mxu0 0.0
    %2578 = vmatprep.subr.mxu0 0.0
    %2579 = vmatpush1.msra.mxu0 0.0
    %2580 = vmatprep.subr.mxu0 0.0
    %2581 = vmatpush1.msra.mxu0 0.0
    %2582 = vmatprep.subr.mxu0 0.0
    %2583 = vmatpush1.msra.mxu0 0.0
    %2584 = vmatprep.subr.mxu0 0.0
    %2585 = vmatpush1.msra.mxu0 0.0
    %2586 = vmatprep.subr.mxu0 0.0
    %2587 = vmatpush1.msra.mxu0 0.0
    %2588 = vmatprep.subr.mxu0 0.0
    %2589 = vmatpush1.msra.mxu0 0.0
    %2590 = vmatprep.subr.mxu0 0.0
    %2591 = vmatpush1.msra.mxu0 0.0
    %2592 = vmatprep.subr.mxu0 0.0
    %2593 = vmatpush1.msra.mxu0 0.0
    %2594 = vmatprep.subr.mxu0 0.0
    %2595 = vmatpush1.msra.mxu0 0.0
    %2596 = vmatprep.subr.mxu0 0.0
    %2597 = vmatpush1.msra.mxu0 0.0
    %2598 = vmatprep.subr.mxu0 0.0
    %2599 = vmatpush1.msra.mxu0 0.0
    %2600 = vmatprep.subr.mxu0 0.0
    %2601 = vmatpush1.msra.mxu0 0.0
    %2602 = vmatprep.subr.mxu0 0.0
    %2603 = vmatpush1.msra.mxu0 0.0
    %2604 = vmatprep.subr.mxu0 0.0
    %2605 = vmatpush1.msra.mxu0 0.0
    %2606 = vmatprep.subr.mxu0 0.0
    %2607 = vmatpush1.msra.mxu0 0.0
    %2608 = vmatprep.subr.mxu0 0.0
    %2609 = vmatpush1.msra.mxu0 0.0
    %2610 = vmatprep.subr.mxu0 0.0
    %2611 = vmatpush1.msra.mxu0 0.0
    %2612 = vmatprep.subr.mxu0 0.0
    %2613 = vmatpush1.msra.mxu0 0.0
    %2614 = vmatprep.subr.mxu0 0.0
    %2615 = vmatpush1.msra.mxu0 0.0
    %2616 = vmatprep.subr.mxu0 0.0
    %2617 = vmatpush1.msra.mxu0 0.0
    %2618 = vmatprep.subr.mxu0 0.0
    %2619 = vmatpush1.msra.mxu0 0.0
    %2620 = vmatprep.subr.mxu0 0.0
    %2621 = vmatpush1.msra.mxu0 0.0
    %2622 = vmatprep.subr.mxu0 0.0
    %2623 = vmatpush1.msra.mxu0 0.0
    %2624 = vmatprep.subr.mxu0 0.0
    %2625 = vmatpush1.msra.mxu0 0.0
    %2626 = vmatprep.subr.mxu0 0.0
    %2627 = vmatpush1.msra.mxu0 0.0
    %2628 = vmatprep.subr.mxu0 0.0
    %2629 = vmatpush1.msra.mxu0 0.0
    %2630 = vmatprep.subr.mxu0 0.0
    %2631 = vmatpush1.msra.mxu0 0.0
    %2632 = vmatprep.mubr.f32.mxu0 0.0
    %2633 = vmatmul.mubr.f32.gmra.mrb[0].mxu0 %v2566
    %v2634 = vpop.f32.mrb[0].mxu0
    %v2635 = vadd.f32 0.0, %v2634
    %v2636 = vpop.f32.mrb[0].mxu0
    %2637 = vdwg.mxu0
    %v2639 = vsel %vm1834, %v1829, 0
    %2641 = vmatprep.subr.mxu0 0.0
    %2642 = vmatpush1.msra.mxu0 %v56
    %2643 = vmatprep.subr.mxu0 0.0
    %2644 = vmatpush1.msra.mxu0 %v57
    %2645 = vmatprep.subr.mxu0 0.0
    %2646 = vmatpush1.msra.mxu0 0.0
    %2647 = vmatprep.subr.mxu0 0.0
    %2648 = vmatpush1.msra.mxu0 0.0
    %2649 = vmatprep.subr.mxu0 0.0
    %2650 = vmatpush1.msra.mxu0 0.0
    %2651 = vmatprep.subr.mxu0 0.0
    %2652 = vmatpush1.msra.mxu0 0.0
    %2653 = vmatprep.subr.mxu0 0.0
    %2654 = vmatpush1.msra.mxu0 0.0
    %2655 = vmatprep.subr.mxu0 0.0
    %2656 = vmatpush1.msra.mxu0 0.0
    %2657 = vmatprep.subr.mxu0 0.0
    %2658 = vmatpush1.msra.mxu0 0.0
    %2659 = vmatprep.subr.mxu0 0.0
    %2660 = vmatpush1.msra.mxu0 0.0
    %2661 = vmatprep.subr.mxu0 0.0
    %2662 = vmatpush1.msra.mxu0 0.0
    %2663 = vmatprep.subr.mxu0 0.0
    %2664 = vmatpush1.msra.mxu0 0.0
    %2665 = vmatprep.subr.mxu0 0.0
    %2666 = vmatpush1.msra.mxu0 0.0
    %2667 = vmatprep.subr.mxu0 0.0
    %2668 = vmatpush1.msra.mxu0 0.0
    %2669 = vmatprep.subr.mxu0 0.0
    %2670 = vmatpush1.msra.mxu0 0.0
    %2671 = vmatprep.subr.mxu0 0.0
    %2672 = vmatpush1.msra.mxu0 0.0
    %2673 = vmatprep.subr.mxu0 0.0
    %2674 = vmatpush1.msra.mxu0 0.0
    %2675 = vmatprep.subr.mxu0 0.0
    %2676 = vmatpush1.msra.mxu0 0.0
    %2677 = vmatprep.subr.mxu0 0.0
    %2678 = vmatpush1.msra.mxu0 0.0
    %2679 = vmatprep.subr.mxu0 0.0
    %2680 = vmatpush1.msra.mxu0 0.0
    %2681 = vmatprep.subr.mxu0 0.0
    %2682 = vmatpush1.msra.mxu0 0.0
    %2683 = vmatprep.subr.mxu0 0.0
    %2684 = vmatpush1.msra.mxu0 0.0
    %2685 = vmatprep.subr.mxu0 0.0
    %2686 = vmatpush1.msra.mxu0 0.0
    %2687 = vmatprep.subr.mxu0 0.0
    %2688 = vmatpush1.msra.mxu0 0.0
    %2689 = vmatprep.subr.mxu0 0.0
    %2690 = vmatpush1.msra.mxu0 0.0
    %2691 = vmatprep.subr.mxu0 0.0
    %2692 = vmatpush1.msra.mxu0 0.0
    %2693 = vmatprep.subr.mxu0 0.0
    %2694 = vmatpush1.msra.mxu0 0.0
    %2695 = vmatprep.subr.mxu0 0.0
    %2696 = vmatpush1.msra.mxu0 0.0
    %2697 = vmatprep.subr.mxu0 0.0
    %2698 = vmatpush1.msra.mxu0 0.0
    %2699 = vmatprep.subr.mxu0 0.0
    %2700 = vmatpush1.msra.mxu0 0.0
    %2701 = vmatprep.subr.mxu0 0.0
    %2702 = vmatpush1.msra.mxu0 0.0
    %2703 = vmatprep.subr.mxu0 0.0
    %2704 = vmatpush1.msra.mxu0 0.0
    %2705 = vmatprep.mubr.f32.mxu0 0.0
    %2706 = vmatmul.mubr.f32.gmra.mrb[0].mxu0 %v2639
    %v2707 = vpop.f32.mrb[0].mxu0
    %v2708 = vadd.f32 0.0, %v2707
    %v2709 = vpop.f32.mrb[0].mxu0
    %2710 = vdwg.mxu0
    %v2712 = vsel %vm1834, %v1830, 0
    %2714 = vmatprep.subr.mxu0 0.0
    %2715 = vmatpush1.msra.mxu0 %v58
    %2716 = vmatprep.subr.mxu0 0.0
    %2717 = vmatpush1.msra.mxu0 %v59
    %2718 = vmatprep.subr.mxu0 0.0
    %2719 = vmatpush1.msra.mxu0 0.0
    %2720 = vmatprep.subr.mxu0 0.0
    %2721 = vmatpush1.msra.mxu0 0.0
    %2722 = vmatprep.subr.mxu0 0.0
    %2723 = vmatpush1.msra.mxu0 0.0
    %2724 = vmatprep.subr.mxu0 0.0
    %2725 = vmatpush1.msra.mxu0 0.0
    %2726 = vmatprep.subr.mxu0 0.0
    %2727 = vmatpush1.msra.mxu0 0.0
    %2728 = vmatprep.subr.mxu0 0.0
    %2729 = vmatpush1.msra.mxu0 0.0
    %2730 = vmatprep.subr.mxu0 0.0
    %2731 = vmatpush1.msra.mxu0 0.0
    %2732 = vmatprep.subr.mxu0 0.0
    %2733 = vmatpush1.msra.mxu0 0.0
    %2734 = vmatprep.subr.mxu0 0.0
    %2735 = vmatpush1.msra.mxu0 0.0
    %2736 = vmatprep.subr.mxu0 0.0
    %2737 = vmatpush1.msra.mxu0 0.0
    %2738 = vmatprep.subr.mxu0 0.0
    %2739 = vmatpush1.msra.mxu0 0.0
    %2740 = vmatprep.subr.mxu0 0.0
    %2741 = vmatpush1.msra.mxu0 0.0
    %2742 = vmatprep.subr.mxu0 0.0
    %2743 = vmatpush1.msra.mxu0 0.0
    %2744 = vmatprep.subr.mxu0 0.0
    %2745 = vmatpush1.msra.mxu0 0.0
    %2746 = vmatprep.subr.mxu0 0.0
    %2747 = vmatpush1.msra.mxu0 0.0
    %2748 = vmatprep.subr.mxu0 0.0
    %2749 = vmatpush1.msra.mxu0 0.0
    %2750 = vmatprep.subr.mxu0 0.0
    %2751 = vmatpush1.msra.mxu0 0.0
    %2752 = vmatprep.subr.mxu0 0.0
    %2753 = vmatpush1.msra.mxu0 0.0
    %2754 = vmatprep.subr.mxu0 0.0
    %2755 = vmatpush1.msra.mxu0 0.0
    %2756 = vmatprep.subr.mxu0 0.0
    %2757 = vmatpush1.msra.mxu0 0.0
    %2758 = vmatprep.subr.mxu0 0.0
    %2759 = vmatpush1.msra.mxu0 0.0
    %2760 = vmatprep.subr.mxu0 0.0
    %2761 = vmatpush1.msra.mxu0 0.0
    %2762 = vmatprep.subr.mxu0 0.0
    %2763 = vmatpush1.msra.mxu0 0.0
    %2764 = vmatprep.subr.mxu0 0.0
    %2765 = vmatpush1.msra.mxu0 0.0
    %2766 = vmatprep.subr.mxu0 0.0
    %2767 = vmatpush1.msra.mxu0 0.0
    %2768 = vmatprep.subr.mxu0 0.0
    %2769 = vmatpush1.msra.mxu0 0.0
    %2770 = vmatprep.subr.mxu0 0.0
    %2771 = vmatpush1.msra.mxu0 0.0
    %2772 = vmatprep.subr.mxu0 0.0
    %2773 = vmatpush1.msra.mxu0 0.0
    %2774 = vmatprep.subr.mxu0 0.0
    %2775 = vmatpush1.msra.mxu0 0.0
    %2776 = vmatprep.subr.mxu0 0.0
    %2777 = vmatpush1.msra.mxu0 0.0
    %2778 = vmatprep.mubr.f32.mxu0 0.0
    %2779 = vmatmul.mubr.f32.gmra.mrb[0].mxu0 %v2712
    %v2780 = vpop.f32.mrb[0].mxu0
    %v2781 = vadd.f32 0.0, %v2780
    %v2782 = vpop.f32.mrb[0].mxu0
    %2783 = vdwg.mxu0
    %v2785 = vsel %vm1834, %v1831, 0
    %2787 = vmatprep.subr.mxu0 0.0
    %2788 = vmatpush1.msra.mxu0 %v60
    %2789 = vmatprep.subr.mxu0 0.0
    %2790 = vmatpush1.msra.mxu0 %v61
    %2791 = vmatprep.subr.mxu0 0.0
    %2792 = vmatpush1.msra.mxu0 0.0
    %2793 = vmatprep.subr.mxu0 0.0
    %2794 = vmatpush1.msra.mxu0 0.0
    %2795 = vmatprep.subr.mxu0 0.0
    %2796 = vmatpush1.msra.mxu0 0.0
    %2797 = vmatprep.subr.mxu0 0.0
    %2798 = vmatpush1.msra.mxu0 0.0
    %2799 = vmatprep.subr.mxu0 0.0
    %2800 = vmatpush1.msra.mxu0 0.0
    %2801 = vmatprep.subr.mxu0 0.0
    %2802 = vmatpush1.msra.mxu0 0.0
    %2803 = vmatprep.subr.mxu0 0.0
    %2804 = vmatpush1.msra.mxu0 0.0
    %2805 = vmatprep.subr.mxu0 0.0
    %2806 = vmatpush1.msra.mxu0 0.0
    %2807 = vmatprep.subr.mxu0 0.0
    %2808 = vmatpush1.msra.mxu0 0.0
    %2809 = vmatprep.subr.mxu0 0.0
    %2810 = vmatpush1.msra.mxu0 0.0
    %2811 = vmatprep.subr.mxu0 0.0
    %2812 = vmatpush1.msra.mxu0 0.0
    %2813 = vmatprep.subr.mxu0 0.0
    %2814 = vmatpush1.msra.mxu0 0.0
    %2815 = vmatprep.subr.mxu0 0.0
    %2816 = vmatpush1.msra.mxu0 0.0
    %2817 = vmatprep.subr.mxu0 0.0
    %2818 = vmatpush1.msra.mxu0 0.0
    %2819 = vmatprep.subr.mxu0 0.0
    %2820 = vmatpush1.msra.mxu0 0.0
    %2821 = vmatprep.subr.mxu0 0.0
    %2822 = vmatpush1.msra.mxu0 0.0
    %2823 = vmatprep.subr.mxu0 0.0
    %2824 = vmatpush1.msra.mxu0 0.0
    %2825 = vmatprep.subr.mxu0 0.0
    %2826 = vmatpush1.msra.mxu0 0.0
    %2827 = vmatprep.subr.mxu0 0.0
    %2828 = vmatpush1.msra.mxu0 0.0
    %2829 = vmatprep.subr.mxu0 0.0
    %2830 = vmatpush1.msra.mxu0 0.0
    %2831 = vmatprep.subr.mxu0 0.0
    %2832 = vmatpush1.msra.mxu0 0.0
    %2833 = vmatprep.subr.mxu0 0.0
    %2834 = vmatpush1.msra.mxu0 0.0
    %2835 = vmatprep.subr.mxu0 0.0
    %2836 = vmatpush1.msra.mxu0 0.0
    %2837 = vmatprep.subr.mxu0 0.0
    %2838 = vmatpush1.msra.mxu0 0.0
    %2839 = vmatprep.subr.mxu0 0.0
    %2840 = vmatpush1.msra.mxu0 0.0
    %2841 = vmatprep.subr.mxu0 0.0
    %2842 = vmatpush1.msra.mxu0 0.0
    %2843 = vmatprep.subr.mxu0 0.0
    %2844 = vmatpush1.msra.mxu0 0.0
    %2845 = vmatprep.subr.mxu0 0.0
    %2846 = vmatpush1.msra.mxu0 0.0
    %2847 = vmatprep.subr.mxu0 0.0
    %2848 = vmatpush1.msra.mxu0 0.0
    %2849 = vmatprep.subr.mxu0 0.0
    %2850 = vmatpush1.msra.mxu0 0.0
    %2851 = vmatprep.mubr.f32.mxu0 0.0
    %2852 = vmatmul.mubr.f32.gmra.mrb[0].mxu0 %v2785
    %v2853 = vpop.f32.mrb[0].mxu0
    %v2854 = vadd.f32 0.0, %v2853
    %v2855 = vpop.f32.mrb[0].mxu0
    %2856 = vdwg.mxu0
    %v2858 = vsel %vm1834, %v1832, 0
    %2860 = vmatprep.subr.mxu0 0.0
    %2861 = vmatpush1.msra.mxu0 %v62
    %2862 = vmatprep.subr.mxu0 0.0
    %2863 = vmatpush1.msra.mxu0 %v63
    %2864 = vmatprep.subr.mxu0 0.0
    %2865 = vmatpush1.msra.mxu0 0.0
    %2866 = vmatprep.subr.mxu0 0.0
    %2867 = vmatpush1.msra.mxu0 0.0
    %2868 = vmatprep.subr.mxu0 0.0
    %2869 = vmatpush1.msra.mxu0 0.0
    %2870 = vmatprep.subr.mxu0 0.0
    %2871 = vmatpush1.msra.mxu0 0.0
    %2872 = vmatprep.subr.mxu0 0.0
    %2873 = vmatpush1.msra.mxu0 0.0
    %2874 = vmatprep.subr.mxu0 0.0
    %2875 = vmatpush1.msra.mxu0 0.0
    %2876 = vmatprep.subr.mxu0 0.0
    %2877 = vmatpush1.msra.mxu0 0.0
    %2878 = vmatprep.subr.mxu0 0.0
    %2879 = vmatpush1.msra.mxu0 0.0
    %2880 = vmatprep.subr.mxu0 0.0
    %2881 = vmatpush1.msra.mxu0 0.0
    %2882 = vmatprep.subr.mxu0 0.0
    %2883 = vmatpush1.msra.mxu0 0.0
    %2884 = vmatprep.subr.mxu0 0.0
    %2885 = vmatpush1.msra.mxu0 0.0
    %2886 = vmatprep.subr.mxu0 0.0
    %2887 = vmatpush1.msra.mxu0 0.0
    %2888 = vmatprep.subr.mxu0 0.0
    %2889 = vmatpush1.msra.mxu0 0.0
    %2890 = vmatprep.subr.mxu0 0.0
    %2891 = vmatpush1.msra.mxu0 0.0
    %2892 = vmatprep.subr.mxu0 0.0
    %2893 = vmatpush1.msra.mxu0 0.0
    %2894 = vmatprep.subr.mxu0 0.0
    %2895 = vmatpush1.msra.mxu0 0.0
    %2896 = vmatprep.subr.mxu0 0.0
    %2897 = vmatpush1.msra.mxu0 0.0
    %2898 = vmatprep.subr.mxu0 0.0
    %2899 = vmatpush1.msra.mxu0 0.0
    %2900 = vmatprep.subr.mxu0 0.0
    %2901 = vmatpush1.msra.mxu0 0.0
    %2902 = vmatprep.subr.mxu0 0.0
    %2903 = vmatpush1.msra.mxu0 0.0
    %2904 = vmatprep.subr.mxu0 0.0
    %2905 = vmatpush1.msra.mxu0 0.0
    %2906 = vmatprep.subr.mxu0 0.0
    %2907 = vmatpush1.msra.mxu0 0.0
    %2908 = vmatprep.subr.mxu0 0.0
    %2909 = vmatpush1.msra.mxu0 0.0
    %2910 = vmatprep.subr.mxu0 0.0
    %2911 = vmatpush1.msra.mxu0 0.0
    %2912 = vmatprep.subr.mxu0 0.0
    %2913 = vmatpush1.msra.mxu0 0.0
    %2914 = vmatprep.subr.mxu0 0.0
    %2915 = vmatpush1.msra.mxu0 0.0
    %2916 = vmatprep.subr.mxu0 0.0
    %2917 = vmatpush1.msra.mxu0 0.0
    %2918 = vmatprep.subr.mxu0 0.0
    %2919 = vmatpush1.msra.mxu0 0.0
    %2920 = vmatprep.subr.mxu0 0.0
    %2921 = vmatpush1.msra.mxu0 0.0
    %2922 = vmatprep.subr.mxu0 0.0
    %2923 = vmatpush1.msra.mxu0 0.0
    %2924 = vmatprep.mubr.f32.mxu0 0.0
    %2925 = vmatmul.mubr.f32.gmra.mrb[0].mxu0 %v2858
    %v2926 = vpop.f32.mrb[0].mxu0
    %v2927 = vadd.f32 0.0, %v2926
    %v2928 = vpop.f32.mrb[0].mxu0
    %2929 = vdwg.mxu0
    %v2931 = vsel %vm1834, %v1833, 0
    %2933 = vmatprep.subr.mxu0 0.0
    %2934 = vmatpush1.msra.mxu0 %v64
    %2935 = vmatprep.subr.mxu0 0.0
    %2936 = vmatpush1.msra.mxu0 %v65
    %2937 = vmatprep.subr.mxu0 0.0
    %2938 = vmatpush1.msra.mxu0 0.0
    %2939 = vmatprep.subr.mxu0 0.0
    %2940 = vmatpush1.msra.mxu0 0.0
    %2941 = vmatprep.subr.mxu0 0.0
    %2942 = vmatpush1.msra.mxu0 0.0
    %2943 = vmatprep.subr.mxu0 0.0
    %2944 = vmatpush1.msra.mxu0 0.0
    %2945 = vmatprep.subr.mxu0 0.0
    %2946 = vmatpush1.msra.mxu0 0.0
    %2947 = vmatprep.subr.mxu0 0.0
    %2948 = vmatpush1.msra.mxu0 0.0
    %2949 = vmatprep.subr.mxu0 0.0
    %2950 = vmatpush1.msra.mxu0 0.0
    %2951 = vmatprep.subr.mxu0 0.0
    %2952 = vmatpush1.msra.mxu0 0.0
    %2953 = vmatprep.subr.mxu0 0.0
    %2954 = vmatpush1.msra.mxu0 0.0
    %2955 = vmatprep.subr.mxu0 0.0
    %2956 = vmatpush1.msra.mxu0 0.0
    %2957 = vmatprep.subr.mxu0 0.0
    %2958 = vmatpush1.msra.mxu0 0.0
    %2959 = vmatprep.subr.mxu0 0.0
    %2960 = vmatpush1.msra.mxu0 0.0
    %2961 = vmatprep.subr.mxu0 0.0
    %2962 = vmatpush1.msra.mxu0 0.0
    %2963 = vmatprep.subr.mxu0 0.0
    %2964 = vmatpush1.msra.mxu0 0.0
    %2965 = vmatprep.subr.mxu0 0.0
    %2966 = vmatpush1.msra.mxu0 0.0
    %2967 = vmatprep.subr.mxu0 0.0
    %2968 = vmatpush1.msra.mxu0 0.0
    %2969 = vmatprep.subr.mxu0 0.0
    %2970 = vmatpush1.msra.mxu0 0.0
    %2971 = vmatprep.subr.mxu0 0.0
    %2972 = vmatpush1.msra.mxu0 0.0
    %2973 = vmatprep.subr.mxu0 0.0
    %2974 = vmatpush1.msra.mxu0 0.0
    %2975 = vmatprep.subr.mxu0 0.0
    %2976 = vmatpush1.msra.mxu0 0.0
    %2977 = vmatprep.subr.mxu0 0.0
    %2978 = vmatpush1.msra.mxu0 0.0
    %2979 = vmatprep.subr.mxu0 0.0
    %2980 = vmatpush1.msra.mxu0 0.0
    %2981 = vmatprep.subr.mxu0 0.0
    %2982 = vmatpush1.msra.mxu0 0.0
    %2983 = vmatprep.subr.mxu0 0.0
    %2984 = vmatpush1.msra.mxu0 0.0
    %2985 = vmatprep.subr.mxu0 0.0
    %2986 = vmatpush1.msra.mxu0 0.0
    %2987 = vmatprep.subr.mxu0 0.0
    %2988 = vmatpush1.msra.mxu0 0.0
    %2989 = vmatprep.subr.mxu0 0.0
    %2990 = vmatpush1.msra.mxu0 0.0
    %2991 = vmatprep.subr.mxu0 0.0
    %2992 = vmatpush1.msra.mxu0 0.0
    %2993 = vmatprep.subr.mxu0 0.0
    %2994 = vmatpush1.msra.mxu0 0.0
    %2995 = vmatprep.subr.mxu0 0.0
    %2996 = vmatpush1.msra.mxu0 0.0
    %2997 = vmatprep.mubr.f32.mxu0 0.0
    %2998 = vmatmul.mubr.f32.gmra.mrb[0].mxu0 %v2931
    %v2999 = vpop.f32.mrb[0].mxu0
    %v3000 = vadd.f32 0.0, %v2999
    %v3001 = vpop.f32.mrb[0].mxu0
    %3002 = vdwg.mxu0
    %vm3003 = vcmask 258048
    %3004 = vst.msk [vmem:[%s5] sm:$0x1f] %vm3003, %v1905
    %3005 = vst.msk [vmem:[%s5 + $0x8] sm:$0x1f] %vm3003, %v1978
    %3006 = vst.msk [vmem:[%s5 + $0x10] sm:$0x1f] %vm3003, %v2051
    %3007 = vst.msk [vmem:[%s5 + $0x18] sm:$0x1f] %vm3003, %v2124
    %3008 = vst.msk [vmem:[%s5 + $0x20] sm:$0x1f] %vm3003, %v2197
    %3009 = vst.msk [vmem:[%s5 + $0x28] sm:$0x1f] %vm3003, %v2270
    %3010 = vst.msk [vmem:[%s5 + $0x30] sm:$0x1f] %vm3003, %v2343
    %3011 = vst.msk [vmem:[%s5 + $0x38] sm:$0x1f] %vm3003, %v2416
    %3012 = vst.msk [vmem:[%s5 + $0x40] sm:$0x1f] %vm3003, %v2489
    %3013 = vst.msk [vmem:[%s5 + $0x48] sm:$0x1f] %vm3003, %v2562
    %3014 = vst.msk [vmem:[%s5 + $0x50] sm:$0x1f] %vm3003, %v2635
    %3015 = vst.msk [vmem:[%s5 + $0x58] sm:$0x1f] %vm3003, %v2708
    %3016 = vst.msk [vmem:[%s5 + $0x60] sm:$0x1f] %vm3003, %v2781
    %3017 = vst.msk [vmem:[%s5 + $0x68] sm:$0x1f] %vm3003, %v2854
    %3018 = vst.msk [vmem:[%s5 + $0x70] sm:$0x1f] %vm3003, %v2927
    %3019 = vst.msk [vmem:[%s5 + $0x78] sm:$0x1f] %vm3003, %v3000
    // Predicated region
    $region26: #{tpu_custom_call.1} parent=1 // pred_check
      _
    $region27: #{tpu_custom_call.1} parent=1 // pred_check_branch
      %3021 = sbr.rel (0) target = $region29
    $region28: #{tpu_custom_call.1} parent=1 // pred_region
      _
    $region29: #{tpu_custom_call.1} parent=1 // pred_fallthru
      _
    // Predicated region
    $region30: #{tpu_custom_call.1} parent=1 // pred_check
      _
    $region31: #{tpu_custom_call.1} parent=1 // pred_check_branch
      %3023 = sbr.rel (0) target = $region33
    $region32: #{tpu_custom_call.1} parent=1 // pred_region
      _
    $region33: #{tpu_custom_call.1} parent=1 // pred_fallthru
      _
    %3024 = vsyncpa [#allocation3], 1

</llo_original>
